<compile_context>
chip_gen: v6e
topology: v6e:2x2x1
jax: 0.10.0
libtpu: 0.0.40
codegen_flags: <defaults>
</compile_context>

<pallas_src>
import functools

import jax
import jax.numpy as jnp
from jax.experimental import pallas as pl
from jax.experimental.pallas import tpu as pltpu

_BN_EPS = 1e-5


def _third_layer_kernel(v1_ref, v2_ref, v3_ref, v12_ref, v13_ref, v23_ref,
                        a_ref, w12_ref, w13_ref, w23_ref, w2a_ref,
                        b1_ref, b2_ref, o_ref, *, K):
    f32 = jnp.float32

    v1, v2, v3 = v1_ref[...], v2_ref[...], v3_ref[...]
    v12, v13, v23 = v12_ref[...], v13_ref[...], v23_ref[...]

    a = a_ref[...]                      # (TILE_B, 8): [a1,a2,a3,a12,a13,a23,0,0]
    a1, a2, a3 = a[:, 0:1], a[:, 1:2], a[:, 2:3]
    a12, a13, a23 = a[:, 3:4], a[:, 4:5], a[:, 5:6]

    b1 = b1_ref[...]                    # (1, K) folded Linear+BN bias (f32)
    b2 = b2_ref[...]

    def dot(x, w):                      # bf16 x bf16 -> f32 accumulation on MXU
        return jnp.dot(x, w, preferred_element_type=f32)

    def rdot(x, y):
        # Row-wise dot: VPU multiply + XLU lane reduce, done in f32.
        # Zero-padded lanes (k..K) contribute 0.
        # TODO(synk): if a bundle dump shows the vector-extended slot saturated,
        # switch this to an MXU matmul against a constant (K,128) ones matrix.
        return jnp.sum(x.astype(f32) * y.astype(f32), axis=-1, keepdims=True)

    # ---- fused MXU matmuls (shared-LHS RHS weights concatenated along N) ----
    p12 = dot(v12, w12_ref[...])        # (tb, 2K): [v12@W1a | v12@W2b]
    p13 = dot(v13, w13_ref[...])        # (tb, 3K): [v13@W1a | v13@W1b | v13@W2b]
    p23 = dot(v23, w23_ref[...])        # (tb, 2K): [v23@W1b | v23@W2b]
    q1 = dot(v1, w2a_ref[...])          # (tb, K) : v1 @ W2a
    q2 = dot(v2, w2a_ref[...])
    q3 = dot(v3, w2a_ref[...])

    p12a, p12c = p12[:, :K], p12[:, K:]
    p13a, p13b, p13c = p13[:, :K], p13[:, K:2 * K], p13[:, 2 * K:]
    p23b, p23c = p23[:, :K], p23[:, K:]

    # ---- fusion_module_1 (SecondLayer on V_12, V_13, V_23) ----
    V_1213 = p12a + p13b + b1           # MNFN1(V_12, V_13)
    V_1223 = p12a + p23b + b1           # MNFN1(V_12, V_23)
    V_1323 = p13a + p23b + b1           # MNFN1(V_13, V_23)

    S_12 = rdot(v12, v13)
    S_13 = rdot(v12, v23)
    S_23 = rdot(v13, v23)
    a12h = (a12 + a13) / (S_12 + 0.5)
    a13h = (a12 + a23) / (S_13 + 0.5)
    a23h = (a13 + a23) / (S_23 + 0.5)
    a_1213 = a12h / (a13h + a23h)
    a_1223 = a13h / (a12h + a23h)
    a_1323 = a23h / (a12h + a13h)

    # ---- fusion_module_2 (fusion_layer_for_thirdmodal) ----
    V_1_23 = q1 + p23c + b2             # MNFN2(V_1, V_23)
    V_2_13 = q2 + p13c + b2             # MNFN2(V_2, V_13)
    V_3_12 = q3 + p12c + b2             # MNFN2(V_3, V_12)

    S_1_23 = rdot(v1, v23)
    S_2_13 = rdot(v2, v13)
    S_3_12 = rdot(v3, v12)
    a123h = (a1 + a23) / (S_1_23 + 0.5)
    a213h = (a2 + a13) / (S_2_13 + 0.5)
    a312h = (a3 + a12) / (S_3_12 + 0.5)
    a_1_23 = a123h / (a213h + a312h)
    a_2_13 = a213h / (a123h + a312h)
    a_3_12 = a312h / (a123h + a213h)

    o = (a_1_23 * V_1_23 + a_2_13 * V_2_13 + a_3_12 * V_3_12
         + a_1213 * V_1213 + a_1223 * V_1223 + a_1323 * V_1323)
    o_ref[...] = o.astype(o_ref.dtype)


def fold_linear_batchnorm(w, b, gamma, beta, running_mean, running_var,
                          eps=_BN_EPS):
    """Fold Linear(2k->k) + eval-mode BatchNorm1d(k) into two (k,k) halves + bias.

    w: (k, 2k) PyTorch Linear weight, b: (k,).  Returns (Wa_T, Wb_T, b_f) such
    that  BN(Linear(cat([xa, xb]))) == xa @ Wa_T + xb @ Wb_T + b_f.
    """
    k = w.shape[0]
    scale = gamma / jnp.sqrt(running_var + eps)
    w_f = (w * scale[:, None]).T                    # (2k, k)
    b_f = ((b - running_mean) * scale + beta).reshape(1, k)
    return w_f[:k], w_f[k:], b_f


def _choose_tile_b(B):
    """Batch tile: tiny batches run as one grid step (per-step overhead ~0.35us
    dominates); larger batches get >=2-8 pipelined grid steps with tiles in
    [256, 1024] rows (multiple of 8; 1024 keeps buffers well under v7x's
    64 MiB per-TC VMEM even with double-buffering)."""
    if B <= 256:
        return B
    tb = -(-B // 8)                     # aim for ~8 grid steps
    tb = max(256, min(1024, tb))
    return max(8, (tb // 8) * 8)


def third_layer_forward(v1, v2, v3, v12, v13, v23,
                        a1, a2, a3, a12, a13, a23,
                        params1, params2, *, tile_b=None):
    """Pallas forward of ThirdLayer.

    params1 / params2: (w, b, gamma, beta, running_mean, running_var) for the
    MultiLayerNeuralFusionNetwork of fusion_module_1 / fusion_module_2.
    Returns O of shape (B, k) float32.
    """
    B, k = v1.shape
    K = ((k + 127) // 128) * 128        # lane-pad feature dim to multiple of 128
    out_dtype = v1.dtype
    stream_dtype = jnp.bfloat16         # halve HBM bytes on the mem-bound streams

    # ---- fold BN into the Linear, pad to K, build fused RHS weight slabs ----
    w1a, w1b, b1 = fold_linear_batchnorm(*params1)
    w2a, w2b, b2 = fold_linear_batchnorm(*params2)

    def pad_w(w):
        return jnp.pad(w, ((0, K - k), (0, K - k)))

    def pad_b(b):
        return jnp.pad(b, ((0, 0), (0, K - k))).astype(jnp.float32)

    def pad_v(v):
        return jnp.pad(v, ((0, 0), (0, K - k))).astype(stream_dtype)

    w1a_p, w1b_p, w2a_p, w2b_p = map(pad_w, (w1a, w1b, w2a, w2b))
    w12 = jnp.concatenate([w1a_p, w2b_p], axis=1).astype(stream_dtype)        # (K, 2K)
    w13 = jnp.concatenate([w1a_p, w1b_p, w2b_p], axis=1).astype(stream_dtype)  # (K, 3K)
    w23 = jnp.concatenate([w1b_p, w2b_p], axis=1).astype(stream_dtype)        # (K, 2K)
    w2a_s = w2a_p.astype(stream_dtype)                                         # (K, K)
    b1_p, b2_p = pad_b(b1), pad_b(b2)

    v1p, v2p, v3p = pad_v(v1), pad_v(v2), pad_v(v3)
    v12p, v13p, v23p = pad_v(v12), pad_v(v13), pad_v(v23)

    # Pack the six narrow (B,1) gates into one lane-packed (B,8) f32 side input.
    zeros = jnp.zeros((B, 1), jnp.float32)
    a_pack = jnp.concatenate(
        [a1, a2, a3, a12, a13, a23, zeros, zeros], axis=1).astype(jnp.float32)

    tb = _choose_tile_b(B) if tile_b is None else max(8, min(tile_b, B))
    grid = (pl.cdiv(B, tb),)

    v_spec = pl.BlockSpec((tb, K), lambda i: (i, 0))
    a_spec = pl.BlockSpec((tb, 8), lambda i: (i, 0))
    o_spec = pl.BlockSpec((tb, K), lambda i: (i, 0))

    vmem_bytes = (
        6 * 2 * tb * K * 2          # six bf16 activation streams, double-buffered
        + 2 * tb * 8 * 4            # packed gates
        + 2 * tb * K * 4            # f32 output double buffer
        + 2 * 8 * K * K * 2         # fused bf16 weights (worst case double-buffered)
        + 4 * K * 4                 # biases
        + 28 * tb * K * 4           # f32 intermediates headroom
    )
    vmem_limit = int(min(max(vmem_bytes, 32 << 20), 56 << 20))

    cost = pl.CostEstimate(
        flops=2 * B * K * (10 * K) + 80 * B * K,
        transcendentals=0,
        bytes_accessed=(6 * B * K + 8 * K * K) * 2 + (B * K + 2 * K) * 4 + 8 * B * 4,
    )

    def make_call(weight_pipeline_mode):
        const_kw = ({} if weight_pipeline_mode is None
                    else {"pipeline_mode": weight_pipeline_mode})

        def const_spec(shape):          # VMEM-resident across all grid steps
            return pl.BlockSpec(shape, lambda i: (0, 0), **const_kw)

        in_specs = ([v_spec] * 6 + [a_spec,
                                    const_spec((K, 2 * K)),
                                    const_spec((K, 3 * K)),
                                    const_spec((K, 2 * K)),
                                    const_spec((K, K)),
                                    const_spec((1, K)),
                                    const_spec((1, K))])
        return pl.pallas_call(
            functools.partial(_third_layer_kernel, K=K),
            out_shape=jax.ShapeDtypeStruct((B, K), out_dtype),
            grid=grid,
            in_specs=in_specs,
            out_specs=o_spec,
            compiler_params=pltpu.CompilerParams(
                dimension_semantics=("parallel",),
                vmem_limit_bytes=vmem_limit,
            ),
            cost_estimate=cost,
        )

    args = (v1p, v2p, v3p, v12p, v13p, v23p, a_pack,
            w12, w13, w23, w2a_s, b1_p, b2_p)
    try:
        out = make_call(pl.Buffered(1))(*args)      # single-buffer constant weights
    except Exception:
        # Fallback: if this jax version rejects Buffered(1) pipeline_mode, the
        # constant index_map already keeps the weights resident (double-buffered).
        out = make_call(None)(*args)
    return out[:, :k]


# ----------------------------- reference (plain JAX) -----------------------------
def _ref_third_layer(v1, v2, v3, v12, v13, v23, a1, a2, a3, a12, a13, a23,
                     p1, p2):
    def mnfn(xa, xb, p):
        w, b, gamma, beta, rm, rv = p
        y = jnp.concatenate([xa, xb], axis=1) @ w.T + b
        return (y - rm) / jnp.sqrt(rv + _BN_EPS) * gamma + beta

    def rdot(x, y):
        return jnp.sum(x * y, axis=-1, keepdims=True)

    # SecondLayer on (V_12, V_13, V_23, a_12, a_13, a_23)
    V_1213 = mnfn(v12, v13, p1)
    V_1223 = mnfn(v12, v23, p1)
    V_1323 = mnfn(v13, v23, p1)
    S_12, S_13, S_23 = rdot(v12, v13), rdot(v12, v23), rdot(v13, v23)
    a12h = (a12 + a13) / (S_12 + 0.5)
    a13h = (a12 + a23) / (S_13 + 0.5)
    a23h = (a13 + a23) / (S_23 + 0.5)
    a_1213 = a12h / (a13h + a23h)
    a_1223 = a13h / (a12h + a23h)
    a_1323 = a23h / (a12h + a13h)

    # fusion_layer_for_thirdmodal
    V_1_23 = mnfn(v1, v23, p2)
    V_2_13 = mnfn(v2, v13, p2)
    V_3_12 = mnfn(v3, v12, p2)
    S_1_23, S_2_13, S_3_12 = rdot(v1, v23), rdot(v2, v13), rdot(v3, v12)
    a123h = (a1 + a23) / (S_1_23 + 0.5)
    a213h = (a2 + a13) / (S_2_13 + 0.5)
    a312h = (a3 + a12) / (S_3_12 + 0.5)
    a_1_23 = a123h / (a213h + a312h)
    a_2_13 = a213h / (a123h + a312h)
    a_3_12 = a312h / (a123h + a213h)

    return (a_1_23 * V_1_23 + a_2_13 * V_2_13 + a_3_12 * V_3_12
            + a_1213 * V_1213 + a_1223 * V_1223 + a_1323 * V_1323)


if __name__ == "__main__":
    k = 120  # modality dim (module default)

    def run_case(B, key):
        ks = jax.random.split(key, 24)

        # Modality / fused vectors: small-magnitude normals (post-fusion features).
        mk_v = lambda kk: 0.1 * jax.random.normal(kk, (B, k), dtype=jnp.float32)
        V_1, V_2, V_3 = mk_v(ks[0]), mk_v(ks[1]), mk_v(ks[2])
        V_12, V_13, V_23 = mk_v(ks[3]), mk_v(ks[4]), mk_v(ks[5])

        # Gates a_* come from sigmoids upstream -> (0, 1).
        mk_a = lambda kk: jax.random.uniform(kk, (B, 1), dtype=jnp.float32)
        a_1, a_2, a_3 = mk_a(ks[6]), mk_a(ks[7]), mk_a(ks[8])
        a_12, a_13, a_23 = mk_a(ks[9]), mk_a(ks[10]), mk_a(ks[11])

        # Linear(2k -> k) + BatchNorm1d(k) parameters for the two fusion networks.
        bound = 1.0 / jnp.sqrt(2.0 * k)

        def make_params(k0, k1, k2, k3, k4, k5):
            w = jax.random.uniform(k0, (k, 2 * k), jnp.float32, -bound, bound)
            b = jax.random.uniform(k1, (k,), jnp.float32, -bound, bound)
            gamma = jax.random.uniform(k2, (k,), jnp.float32, 0.5, 1.5)
            beta = 0.1 * jax.random.normal(k3, (k,), jnp.float32)
            rm = 0.1 * jax.random.normal(k4, (k,), jnp.float32)
            rv = jax.random.uniform(k5, (k,), jnp.float32, 0.5, 1.5)
            return (w, b, gamma, beta, rm, rv)

        params1 = make_params(*ks[12:18])
        params2 = make_params(*ks[18:24])

        O = third_layer_forward(V_1, V_2, V_3, V_12, V_13, V_23,
                                a_1, a_2, a_3, a_12, a_13, a_23,
                                params1, params2)
        O = jax.block_until_ready(O)

        O_ref = _ref_third_layer(V_1, V_2, V_3, V_12, V_13, V_23,
                                 a_1, a_2, a_3, a_12, a_13, a_23,
                                 params1, params2)

        assert O.shape == (B, k), f"bad output shape {O.shape}"
        max_err = float(jnp.max(jnp.abs(O - O_ref)))
        # bf16 activation/weight streaming (f32 accumulation) -> relaxed tolerance
        assert jnp.allclose(O, O_ref, atol=1e-2, rtol=1e-2), (
            f"O mismatch vs reference (B={B}, max abs err={max_err})")

    key = jax.random.PRNGKey(0)
    k_small, k_big = jax.random.split(key)
    run_case(16, k_small)    # tiny batch: single grid step
    run_case(300, k_big)     # multi-step grid with a padded last tile
    print("KERNEL_OK")
</pallas_src>

<mosaic_0001>
module attributes {stable_mosaic.version = 11 : i64} {
  func.func @_third_layer_kernel(%arg0: i32, %arg1: memref<16x128xbf16, #tpu.memory_space<vmem>>, %arg2: memref<16x128xbf16, #tpu.memory_space<vmem>>, %arg3: memref<16x128xbf16, #tpu.memory_space<vmem>>, %arg4: memref<16x128xbf16, #tpu.memory_space<vmem>>, %arg5: memref<16x128xbf16, #tpu.memory_space<vmem>>, %arg6: memref<16x128xbf16, #tpu.memory_space<vmem>>, %arg7: memref<16x8xf32, #tpu.memory_space<vmem>>, %arg8: memref<128x256xbf16, #tpu.memory_space<vmem>>, %arg9: memref<128x384xbf16, #tpu.memory_space<vmem>>, %arg10: memref<128x256xbf16, #tpu.memory_space<vmem>>, %arg11: memref<128x128xbf16, #tpu.memory_space<vmem>>, %arg12: memref<1x128xf32, #tpu.memory_space<vmem>>, %arg13: memref<1x128xf32, #tpu.memory_space<vmem>>, %arg14: memref<16x128xf32, #tpu.memory_space<vmem>>) attributes {dimension_semantics = [#tpu.dimension_semantics<parallel>], iteration_bounds = array<i64: 1>, scalar_prefetch = 0 : i64, scratch_operands = 0 : i64, tpu.core_type = #tpu.core_type<tc>, window_params = [{transform_indices = @transform_0, window_bounds = array<i64: 16, 128>}, {transform_indices = @transform_1, window_bounds = array<i64: 16, 128>}, {transform_indices = @transform_2, window_bounds = array<i64: 16, 128>}, {transform_indices = @transform_3, window_bounds = array<i64: 16, 128>}, {transform_indices = @transform_4, window_bounds = array<i64: 16, 128>}, {transform_indices = @transform_5, window_bounds = array<i64: 16, 128>}, {transform_indices = @transform_6, window_bounds = array<i64: 16, 8>}, {pipeline_mode = #tpu.pipeline_mode<synchronous>, transform_indices = @transform_7, window_bounds = array<i64: 128, 256>}, {pipeline_mode = #tpu.pipeline_mode<synchronous>, transform_indices = @transform_8, window_bounds = array<i64: 128, 384>}, {pipeline_mode = #tpu.pipeline_mode<synchronous>, transform_indices = @transform_9, window_bounds = array<i64: 128, 256>}, {pipeline_mode = #tpu.pipeline_mode<synchronous>, transform_indices = @transform_10, window_bounds = array<i64: 128, 128>}, {pipeline_mode = #tpu.pipeline_mode<synchronous>, transform_indices = @transform_11, window_bounds = array<i64: 1, 128>}, {pipeline_mode = #tpu.pipeline_mode<synchronous>, transform_indices = @transform_12, window_bounds = array<i64: 1, 128>}, {transform_indices = @transform_13, window_bounds = array<i64: 16, 128>}]} {
    %c0 = arith.constant 0 : index
    %c0_0 = arith.constant 0 : index
    %0 = vector.load %arg1[%c0, %c0_0] : memref<16x128xbf16, #tpu.memory_space<vmem>>, vector<16x128xbf16>
    %c0_1 = arith.constant 0 : index
    %c0_2 = arith.constant 0 : index
    %1 = vector.load %arg2[%c0_1, %c0_2] : memref<16x128xbf16, #tpu.memory_space<vmem>>, vector<16x128xbf16>
    %c0_3 = arith.constant 0 : index
    %c0_4 = arith.constant 0 : index
    %2 = vector.load %arg3[%c0_3, %c0_4] : memref<16x128xbf16, #tpu.memory_space<vmem>>, vector<16x128xbf16>
    %c0_5 = arith.constant 0 : index
    %c0_6 = arith.constant 0 : index
    %3 = vector.load %arg4[%c0_5, %c0_6] : memref<16x128xbf16, #tpu.memory_space<vmem>>, vector<16x128xbf16>
    %c0_7 = arith.constant 0 : index
    %c0_8 = arith.constant 0 : index
    %4 = vector.load %arg5[%c0_7, %c0_8] : memref<16x128xbf16, #tpu.memory_space<vmem>>, vector<16x128xbf16>
    %c0_9 = arith.constant 0 : index
    %c0_10 = arith.constant 0 : index
    %5 = vector.load %arg6[%c0_9, %c0_10] : memref<16x128xbf16, #tpu.memory_space<vmem>>, vector<16x128xbf16>
    %c0_11 = arith.constant 0 : index
    %c0_12 = arith.constant 0 : index
    %6 = vector.load %arg7[%c0_11, %c0_12] : memref<16x8xf32, #tpu.memory_space<vmem>>, vector<16x8xf32>
    %7 = vector.extract_strided_slice %6 {offsets = [0, 0], sizes = [16, 1], strides = [1, 1]} : vector<16x8xf32> to vector<16x1xf32>
    %8 = vector.extract_strided_slice %6 {offsets = [0, 1], sizes = [16, 1], strides = [1, 1]} : vector<16x8xf32> to vector<16x1xf32>
    %9 = vector.extract_strided_slice %6 {offsets = [0, 2], sizes = [16, 1], strides = [1, 1]} : vector<16x8xf32> to vector<16x1xf32>
    %10 = vector.extract_strided_slice %6 {offsets = [0, 3], sizes = [16, 1], strides = [1, 1]} : vector<16x8xf32> to vector<16x1xf32>
    %11 = vector.extract_strided_slice %6 {offsets = [0, 4], sizes = [16, 1], strides = [1, 1]} : vector<16x8xf32> to vector<16x1xf32>
    %12 = vector.extract_strided_slice %6 {offsets = [0, 5], sizes = [16, 1], strides = [1, 1]} : vector<16x8xf32> to vector<16x1xf32>
    %c0_13 = arith.constant 0 : index
    %c0_14 = arith.constant 0 : index
    %13 = vector.load %arg12[%c0_13, %c0_14] : memref<1x128xf32, #tpu.memory_space<vmem>>, vector<1x128xf32>
    %c0_15 = arith.constant 0 : index
    %c0_16 = arith.constant 0 : index
    %14 = vector.load %arg13[%c0_15, %c0_16] : memref<1x128xf32, #tpu.memory_space<vmem>>, vector<1x128xf32>
    %c0_17 = arith.constant 0 : index
    %c0_18 = arith.constant 0 : index
    %15 = vector.load %arg8[%c0_17, %c0_18] : memref<128x256xbf16, #tpu.memory_space<vmem>>, vector<128x256xbf16>
    %cst = arith.constant dense<0.000000e+00> : vector<16x256xf32>
    %16 = tpu.matmul %3, %15, %cst {dimension_numbers = #tpu.dot_dimension_numbers<[1], [0], [0], [1], [0, 0, 1, 1], [], []>} : vector<16x128xbf16>, vector<128x256xbf16>, vector<16x256xf32> -> vector<16x256xf32>
    %c0_19 = arith.constant 0 : index
    %c0_20 = arith.constant 0 : index
    %17 = vector.load %arg9[%c0_19, %c0_20] : memref<128x384xbf16, #tpu.memory_space<vmem>>, vector<128x384xbf16>
    %cst_21 = arith.constant dense<0.000000e+00> : vector<16x384xf32>
    %18 = tpu.matmul %4, %17, %cst_21 {dimension_numbers = #tpu.dot_dimension_numbers<[1], [0], [0], [1], [0, 0, 1, 1], [], []>} : vector<16x128xbf16>, vector<128x384xbf16>, vector<16x384xf32> -> vector<16x384xf32>
    %c0_22 = arith.constant 0 : index
    %c0_23 = arith.constant 0 : index
    %19 = vector.load %arg10[%c0_22, %c0_23] : memref<128x256xbf16, #tpu.memory_space<vmem>>, vector<128x256xbf16>
    %cst_24 = arith.constant dense<0.000000e+00> : vector<16x256xf32>
    %20 = tpu.matmul %5, %19, %cst_24 {dimension_numbers = #tpu.dot_dimension_numbers<[1], [0], [0], [1], [0, 0, 1, 1], [], []>} : vector<16x128xbf16>, vector<128x256xbf16>, vector<16x256xf32> -> vector<16x256xf32>
    %c0_25 = arith.constant 0 : index
    %c0_26 = arith.constant 0 : index
    %21 = vector.load %arg11[%c0_25, %c0_26] : memref<128x128xbf16, #tpu.memory_space<vmem>>, vector<128x128xbf16>
    %cst_27 = arith.constant dense<0.000000e+00> : vector<16x128xf32>
    %22 = tpu.matmul %0, %21, %cst_27 {dimension_numbers = #tpu.dot_dimension_numbers<[1], [0], [0], [1], [0, 0, 1, 1], [], []>} : vector<16x128xbf16>, vector<128x128xbf16>, vector<16x128xf32> -> vector<16x128xf32>
    %c0_28 = arith.constant 0 : index
    %c0_29 = arith.constant 0 : index
    %23 = vector.load %arg11[%c0_28, %c0_29] : memref<128x128xbf16, #tpu.memory_space<vmem>>, vector<128x128xbf16>
    %cst_30 = arith.constant dense<0.000000e+00> : vector<16x128xf32>
    %24 = tpu.matmul %1, %23, %cst_30 {dimension_numbers = #tpu.dot_dimension_numbers<[1], [0], [0], [1], [0, 0, 1, 1], [], []>} : vector<16x128xbf16>, vector<128x128xbf16>, vector<16x128xf32> -> vector<16x128xf32>
    %c0_31 = arith.constant 0 : index
    %c0_32 = arith.constant 0 : index
    %25 = vector.load %arg11[%c0_31, %c0_32] : memref<128x128xbf16, #tpu.memory_space<vmem>>, vector<128x128xbf16>
    %cst_33 = arith.constant dense<0.000000e+00> : vector<16x128xf32>
    %26 = tpu.matmul %2, %25, %cst_33 {dimension_numbers = #tpu.dot_dimension_numbers<[1], [0], [0], [1], [0, 0, 1, 1], [], []>} : vector<16x128xbf16>, vector<128x128xbf16>, vector<16x128xf32> -> vector<16x128xf32>
    %27 = vector.extract_strided_slice %16 {offsets = [0, 0], sizes = [16, 128], strides = [1, 1]} : vector<16x256xf32> to vector<16x128xf32>
    %28 = vector.extract_strided_slice %16 {offsets = [0, 128], sizes = [16, 128], strides = [1, 1]} : vector<16x256xf32> to vector<16x128xf32>
    %29 = vector.extract_strided_slice %18 {offsets = [0, 0], sizes = [16, 128], strides = [1, 1]} : vector<16x384xf32> to vector<16x128xf32>
    %30 = vector.extract_strided_slice %18 {offsets = [0, 128], sizes = [16, 128], strides = [1, 1]} : vector<16x384xf32> to vector<16x128xf32>
    %31 = vector.extract_strided_slice %18 {offsets = [0, 256], sizes = [16, 128], strides = [1, 1]} : vector<16x384xf32> to vector<16x128xf32>
    %32 = vector.extract_strided_slice %20 {offsets = [0, 0], sizes = [16, 128], strides = [1, 1]} : vector<16x256xf32> to vector<16x128xf32>
    %33 = vector.extract_strided_slice %20 {offsets = [0, 128], sizes = [16, 128], strides = [1, 1]} : vector<16x256xf32> to vector<16x128xf32>
    %34 = arith.addf %27, %30 : vector<16x128xf32>
    %35 = vector.broadcast %13 : vector<1x128xf32> to vector<16x128xf32>
    %36 = arith.addf %34, %35 : vector<16x128xf32>
    %37 = arith.addf %27, %32 : vector<16x128xf32>
    %38 = vector.broadcast %13 : vector<1x128xf32> to vector<16x128xf32>
    %39 = arith.addf %37, %38 : vector<16x128xf32>
    %40 = arith.addf %29, %32 : vector<16x128xf32>
    %41 = vector.broadcast %13 : vector<1x128xf32> to vector<16x128xf32>
    %42 = arith.addf %40, %41 : vector<16x128xf32>
    %43 = arith.extf %3 : vector<16x128xbf16> to vector<16x128xf32>
    %44 = arith.extf %4 : vector<16x128xbf16> to vector<16x128xf32>
    %45 = arith.mulf %43, %44 : vector<16x128xf32>
    %cst_34 = arith.constant dense<0.000000e+00> : vector<16xf32>
    %46 = vector.multi_reduction <add>, %45, %cst_34 [1] : vector<16x128xf32> to vector<16xf32>
    %47 = vector.shape_cast %46 : vector<16xf32> to vector<16x1xf32>
    %48 = arith.extf %3 : vector<16x128xbf16> to vector<16x128xf32>
    %49 = arith.extf %5 : vector<16x128xbf16> to vector<16x128xf32>
    %50 = arith.mulf %48, %49 : vector<16x128xf32>
    %cst_35 = arith.constant dense<0.000000e+00> : vector<16xf32>
    %51 = vector.multi_reduction <add>, %50, %cst_35 [1] : vector<16x128xf32> to vector<16xf32>
    %52 = vector.shape_cast %51 : vector<16xf32> to vector<16x1xf32>
    %53 = arith.extf %4 : vector<16x128xbf16> to vector<16x128xf32>
    %54 = arith.extf %5 : vector<16x128xbf16> to vector<16x128xf32>
    %55 = arith.mulf %53, %54 : vector<16x128xf32>
    %cst_36 = arith.constant dense<0.000000e+00> : vector<16xf32>
    %56 = vector.multi_reduction <add>, %55, %cst_36 [1] : vector<16x128xf32> to vector<16xf32>
    %57 = vector.shape_cast %56 : vector<16xf32> to vector<16x1xf32>
    %58 = arith.addf %10, %11 : vector<16x1xf32>
    %cst_37 = arith.constant 5.000000e-01 : f32
    %59 = vector.broadcast %cst_37 : f32 to vector<16x1xf32>
    %60 = arith.addf %47, %59 : vector<16x1xf32>
    %61 = arith.divf %58, %60 : vector<16x1xf32>
    %62 = arith.addf %10, %12 : vector<16x1xf32>
    %cst_38 = arith.constant 5.000000e-01 : f32
    %63 = vector.broadcast %cst_38 : f32 to vector<16x1xf32>
    %64 = arith.addf %52, %63 : vector<16x1xf32>
    %65 = arith.divf %62, %64 : vector<16x1xf32>
    %66 = arith.addf %11, %12 : vector<16x1xf32>
    %cst_39 = arith.constant 5.000000e-01 : f32
    %67 = vector.broadcast %cst_39 : f32 to vector<16x1xf32>
    %68 = arith.addf %57, %67 : vector<16x1xf32>
    %69 = arith.divf %66, %68 : vector<16x1xf32>
    %70 = arith.addf %65, %69 : vector<16x1xf32>
    %71 = arith.divf %61, %70 : vector<16x1xf32>
    %72 = arith.addf %61, %69 : vector<16x1xf32>
    %73 = arith.divf %65, %72 : vector<16x1xf32>
    %74 = arith.addf %61, %65 : vector<16x1xf32>
    %75 = arith.divf %69, %74 : vector<16x1xf32>
    %76 = arith.addf %22, %33 : vector<16x128xf32>
    %77 = vector.broadcast %14 : vector<1x128xf32> to vector<16x128xf32>
    %78 = arith.addf %76, %77 : vector<16x128xf32>
    %79 = arith.addf %24, %31 : vector<16x128xf32>
    %80 = vector.broadcast %14 : vector<1x128xf32> to vector<16x128xf32>
    %81 = arith.addf %79, %80 : vector<16x128xf32>
    %82 = arith.addf %26, %28 : vector<16x128xf32>
    %83 = vector.broadcast %14 : vector<1x128xf32> to vector<16x128xf32>
    %84 = arith.addf %82, %83 : vector<16x128xf32>
    %85 = arith.extf %0 : vector<16x128xbf16> to vector<16x128xf32>
    %86 = arith.extf %5 : vector<16x128xbf16> to vector<16x128xf32>
    %87 = arith.mulf %85, %86 : vector<16x128xf32>
    %cst_40 = arith.constant dense<0.000000e+00> : vector<16xf32>
    %88 = vector.multi_reduction <add>, %87, %cst_40 [1] : vector<16x128xf32> to vector<16xf32>
    %89 = vector.shape_cast %88 : vector<16xf32> to vector<16x1xf32>
    %90 = arith.extf %1 : vector<16x128xbf16> to vector<16x128xf32>
    %91 = arith.extf %4 : vector<16x128xbf16> to vector<16x128xf32>
    %92 = arith.mulf %90, %91 : vector<16x128xf32>
    %cst_41 = arith.constant dense<0.000000e+00> : vector<16xf32>
    %93 = vector.multi_reduction <add>, %92, %cst_41 [1] : vector<16x128xf32> to vector<16xf32>
    %94 = vector.shape_cast %93 : vector<16xf32> to vector<16x1xf32>
    %95 = arith.extf %2 : vector<16x128xbf16> to vector<16x128xf32>
    %96 = arith.extf %3 : vector<16x128xbf16> to vector<16x128xf32>
    %97 = arith.mulf %95, %96 : vector<16x128xf32>
    %cst_42 = arith.constant dense<0.000000e+00> : vector<16xf32>
    %98 = vector.multi_reduction <add>, %97, %cst_42 [1] : vector<16x128xf32> to vector<16xf32>
    %99 = vector.shape_cast %98 : vector<16xf32> to vector<16x1xf32>
    %100 = arith.addf %7, %12 : vector<16x1xf32>
    %cst_43 = arith.constant 5.000000e-01 : f32
    %101 = vector.broadcast %cst_43 : f32 to vector<16x1xf32>
    %102 = arith.addf %89, %101 : vector<16x1xf32>
    %103 = arith.divf %100, %102 : vector<16x1xf32>
    %104 = arith.addf %8, %11 : vector<16x1xf32>
    %cst_44 = arith.constant 5.000000e-01 : f32
    %105 = vector.broadcast %cst_44 : f32 to vector<16x1xf32>
    %106 = arith.addf %94, %105 : vector<16x1xf32>
    %107 = arith.divf %104, %106 : vector<16x1xf32>
    %108 = arith.addf %9, %10 : vector<16x1xf32>
    %cst_45 = arith.constant 5.000000e-01 : f32
    %109 = vector.broadcast %cst_45 : f32 to vector<16x1xf32>
    %110 = arith.addf %99, %109 : vector<16x1xf32>
    %111 = arith.divf %108, %110 : vector<16x1xf32>
    %112 = arith.addf %107, %111 : vector<16x1xf32>
    %113 = arith.divf %103, %112 : vector<16x1xf32>
    %114 = arith.addf %103, %111 : vector<16x1xf32>
    %115 = arith.divf %107, %114 : vector<16x1xf32>
    %116 = arith.addf %103, %107 : vector<16x1xf32>
    %117 = arith.divf %111, %116 : vector<16x1xf32>
    %118 = vector.broadcast %113 : vector<16x1xf32> to vector<16x128xf32>
    %119 = arith.mulf %118, %78 : vector<16x128xf32>
    %120 = vector.broadcast %115 : vector<16x1xf32> to vector<16x128xf32>
    %121 = arith.mulf %120, %81 : vector<16x128xf32>
    %122 = arith.addf %119, %121 : vector<16x128xf32>
    %123 = vector.broadcast %117 : vector<16x1xf32> to vector<16x128xf32>
    %124 = arith.mulf %123, %84 : vector<16x128xf32>
    %125 = arith.addf %122, %124 : vector<16x128xf32>
    %126 = vector.broadcast %71 : vector<16x1xf32> to vector<16x128xf32>
    %127 = arith.mulf %126, %36 : vector<16x128xf32>
    %128 = arith.addf %125, %127 : vector<16x128xf32>
    %129 = vector.broadcast %73 : vector<16x1xf32> to vector<16x128xf32>
    %130 = arith.mulf %129, %39 : vector<16x128xf32>
    %131 = arith.addf %128, %130 : vector<16x128xf32>
    %132 = vector.broadcast %75 : vector<16x1xf32> to vector<16x128xf32>
    %133 = arith.mulf %132, %42 : vector<16x128xf32>
    %134 = arith.addf %131, %133 : vector<16x128xf32>
    %c0_46 = arith.constant 0 : index
    %c0_47 = arith.constant 0 : index
    %135 = vector.load %arg14[%c0_46, %c0_47] : memref<16x128xf32, #tpu.memory_space<vmem>>, vector<16x128xf32>
    tpu.vector_store %arg14[%c0_46, %c0_47], %134 {strides = array<i32>} : memref<16x128xf32, #tpu.memory_space<vmem>>, vector<16x128xf32>,
    return
  }
  func.func @transform_0(%arg0: i32) -> (i32, i32) {
    %c0_i32 = arith.constant 0 : i32
    %c0_i32_0 = arith.constant 0 : i32
    return %arg0, %c0_i32 : i32, i32
  }
  func.func @transform_1(%arg0: i32) -> (i32, i32) {
    %c0_i32 = arith.constant 0 : i32
    %c0_i32_0 = arith.constant 0 : i32
    return %arg0, %c0_i32 : i32, i32
  }
  func.func @transform_2(%arg0: i32) -> (i32, i32) {
    %c0_i32 = arith.constant 0 : i32
    %c0_i32_0 = arith.constant 0 : i32
    return %arg0, %c0_i32 : i32, i32
  }
  func.func @transform_3(%arg0: i32) -> (i32, i32) {
    %c0_i32 = arith.constant 0 : i32
    %c0_i32_0 = arith.constant 0 : i32
    return %arg0, %c0_i32 : i32, i32
  }
  func.func @transform_4(%arg0: i32) -> (i32, i32) {
    %c0_i32 = arith.constant 0 : i32
    %c0_i32_0 = arith.constant 0 : i32
    return %arg0, %c0_i32 : i32, i32
  }
  func.func @transform_5(%arg0: i32) -> (i32, i32) {
    %c0_i32 = arith.constant 0 : i32
    %c0_i32_0 = arith.constant 0 : i32
    return %arg0, %c0_i32 : i32, i32
  }
  func.func @transform_6(%arg0: i32) -> (i32, i32) {
    %c0_i32 = arith.constant 0 : i32
    %c0_i32_0 = arith.constant 0 : i32
    return %arg0, %c0_i32 : i32, i32
  }
  func.func @transform_7(%arg0: i32) -> (i32, i32) {
    %c0_i32 = arith.constant 0 : i32
    %c0_i32_0 = arith.constant 0 : i32
    %c0_i32_1 = arith.constant 0 : i32
    return %c0_i32, %c0_i32_0 : i32, i32
  }
  func.func @transform_8(%arg0: i32) -> (i32, i32) {
    %c0_i32 = arith.constant 0 : i32
    %c0_i32_0 = arith.constant 0 : i32
    %c0_i32_1 = arith.constant 0 : i32
    return %c0_i32, %c0_i32_0 : i32, i32
  }
  func.func @transform_9(%arg0: i32) -> (i32, i32) {
    %c0_i32 = arith.constant 0 : i32
    %c0_i32_0 = arith.constant 0 : i32
    %c0_i32_1 = arith.constant 0 : i32
    return %c0_i32, %c0_i32_0 : i32, i32
  }
  func.func @transform_10(%arg0: i32) -> (i32, i32) {
    %c0_i32 = arith.constant 0 : i32
    %c0_i32_0 = arith.constant 0 : i32
    %c0_i32_1 = arith.constant 0 : i32
    return %c0_i32, %c0_i32_0 : i32, i32
  }
  func.func @transform_11(%arg0: i32) -> (i32, i32) {
    %c0_i32 = arith.constant 0 : i32
    %c0_i32_0 = arith.constant 0 : i32
    %c0_i32_1 = arith.constant 0 : i32
    return %c0_i32, %c0_i32_0 : i32, i32
  }
  func.func @transform_12(%arg0: i32) -> (i32, i32) {
    %c0_i32 = arith.constant 0 : i32
    %c0_i32_0 = arith.constant 0 : i32
    %c0_i32_1 = arith.constant 0 : i32
    return %c0_i32, %c0_i32_0 : i32, i32
  }
  func.func @transform_13(%arg0: i32) -> (i32, i32) {
    %c0_i32 = arith.constant 0 : i32
    %c0_i32_0 = arith.constant 0 : i32
    return %arg0, %c0_i32 : i32, i32
  }
}

module attributes {stable_mosaic.version = 11 : i64} {
  func.func @_third_layer_kernel(%arg0: i32, %arg1: memref<16x128xbf16, #tpu.memory_space<vmem>>, %arg2: memref<16x128xbf16, #tpu.memory_space<vmem>>, %arg3: memref<16x128xbf16, #tpu.memory_space<vmem>>, %arg4: memref<16x128xbf16, #tpu.memory_space<vmem>>, %arg5: memref<16x128xbf16, #tpu.memory_space<vmem>>, %arg6: memref<16x128xbf16, #tpu.memory_space<vmem>>, %arg7: memref<16x8xf32, #tpu.memory_space<vmem>>, %arg8: memref<128x256xbf16, #tpu.memory_space<vmem>>, %arg9: memref<128x384xbf16, #tpu.memory_space<vmem>>, %arg10: memref<128x256xbf16, #tpu.memory_space<vmem>>, %arg11: memref<128x128xbf16, #tpu.memory_space<vmem>>, %arg12: memref<1x128xf32, #tpu.memory_space<vmem>>, %arg13: memref<1x128xf32, #tpu.memory_space<vmem>>, %arg14: memref<16x128xf32, #tpu.memory_space<vmem>>) attributes {dimension_semantics = [#tpu.dimension_semantics<parallel>], iteration_bounds = array<i64: 1>, scalar_prefetch = 0 : i64, scratch_operands = 0 : i64, tpu.core_type = #tpu.core_type<tc>, window_params = [{transform_indices = @transform_0, window_bounds = array<i64: 16, 128>}, {transform_indices = @transform_1, window_bounds = array<i64: 16, 128>}, {transform_indices = @transform_2, window_bounds = array<i64: 16, 128>}, {transform_indices = @transform_3, window_bounds = array<i64: 16, 128>}, {transform_indices = @transform_4, window_bounds = array<i64: 16, 128>}, {transform_indices = @transform_5, window_bounds = array<i64: 16, 128>}, {transform_indices = @transform_6, window_bounds = array<i64: 16, 8>}, {pipeline_mode = #tpu.pipeline_mode<synchronous>, transform_indices = @transform_7, window_bounds = array<i64: 128, 256>}, {pipeline_mode = #tpu.pipeline_mode<synchronous>, transform_indices = @transform_8, window_bounds = array<i64: 128, 384>}, {pipeline_mode = #tpu.pipeline_mode<synchronous>, transform_indices = @transform_9, window_bounds = array<i64: 128, 256>}, {pipeline_mode = #tpu.pipeline_mode<synchronous>, transform_indices = @transform_10, window_bounds = array<i64: 128, 128>}, {pipeline_mode = #tpu.pipeline_mode<synchronous>, transform_indices = @transform_11, window_bounds = array<i64: 1, 128>}, {pipeline_mode = #tpu.pipeline_mode<synchronous>, transform_indices = @transform_12, window_bounds = array<i64: 1, 128>}, {transform_indices = @transform_13, window_bounds = array<i64: 16, 128>}]} {
    %c0 = arith.constant 0 : index
    %c0_0 = arith.constant 0 : index
    %0 = vector.load %arg1[%c0, %c0_0] : memref<16x128xbf16, #tpu.memory_space<vmem>>, vector<16x128xbf16>
    %c0_1 = arith.constant 0 : index
    %c0_2 = arith.constant 0 : index
    %1 = vector.load %arg2[%c0_1, %c0_2] : memref<16x128xbf16, #tpu.memory_space<vmem>>, vector<16x128xbf16>
    %c0_3 = arith.constant 0 : index
    %c0_4 = arith.constant 0 : index
    %2 = vector.load %arg3[%c0_3, %c0_4] : memref<16x128xbf16, #tpu.memory_space<vmem>>, vector<16x128xbf16>
    %c0_5 = arith.constant 0 : index
    %c0_6 = arith.constant 0 : index
    %3 = vector.load %arg4[%c0_5, %c0_6] : memref<16x128xbf16, #tpu.memory_space<vmem>>, vector<16x128xbf16>
    %c0_7 = arith.constant 0 : index
    %c0_8 = arith.constant 0 : index
    %4 = vector.load %arg5[%c0_7, %c0_8] : memref<16x128xbf16, #tpu.memory_space<vmem>>, vector<16x128xbf16>
    %c0_9 = arith.constant 0 : index
    %c0_10 = arith.constant 0 : index
    %5 = vector.load %arg6[%c0_9, %c0_10] : memref<16x128xbf16, #tpu.memory_space<vmem>>, vector<16x128xbf16>
    %c0_11 = arith.constant 0 : index
    %c0_12 = arith.constant 0 : index
    %6 = vector.load %arg7[%c0_11, %c0_12] : memref<16x8xf32, #tpu.memory_space<vmem>>, vector<16x8xf32>
    %7 = vector.extract_strided_slice %6 {offsets = [0, 0], sizes = [16, 1], strides = [1, 1]} : vector<16x8xf32> to vector<16x1xf32>
    %8 = vector.extract_strided_slice %6 {offsets = [0, 1], sizes = [16, 1], strides = [1, 1]} : vector<16x8xf32> to vector<16x1xf32>
    %9 = vector.extract_strided_slice %6 {offsets = [0, 2], sizes = [16, 1], strides = [1, 1]} : vector<16x8xf32> to vector<16x1xf32>
    %10 = vector.extract_strided_slice %6 {offsets = [0, 3], sizes = [16, 1], strides = [1, 1]} : vector<16x8xf32> to vector<16x1xf32>
    %11 = vector.extract_strided_slice %6 {offsets = [0, 4], sizes = [16, 1], strides = [1, 1]} : vector<16x8xf32> to vector<16x1xf32>
    %12 = vector.extract_strided_slice %6 {offsets = [0, 5], sizes = [16, 1], strides = [1, 1]} : vector<16x8xf32> to vector<16x1xf32>
    %c0_13 = arith.constant 0 : index
    %c0_14 = arith.constant 0 : index
    %13 = vector.load %arg12[%c0_13, %c0_14] : memref<1x128xf32, #tpu.memory_space<vmem>>, vector<1x128xf32>
    %c0_15 = arith.constant 0 : index
    %c0_16 = arith.constant 0 : index
    %14 = vector.load %arg13[%c0_15, %c0_16] : memref<1x128xf32, #tpu.memory_space<vmem>>, vector<1x128xf32>
    %c0_17 = arith.constant 0 : index
    %c0_18 = arith.constant 0 : index
    %15 = vector.load %arg8[%c0_17, %c0_18] : memref<128x256xbf16, #tpu.memory_space<vmem>>, vector<128x256xbf16>
    %cst = arith.constant dense<0.000000e+00> : vector<16x256xf32>
    %16 = tpu.matmul %3, %15, %cst {dimension_numbers = #tpu.dot_dimension_numbers<[1], [0], [0], [1], [0, 0, 1, 1], [], []>} : vector<16x128xbf16>, vector<128x256xbf16>, vector<16x256xf32> -> vector<16x256xf32>
    %c0_19 = arith.constant 0 : index
    %c0_20 = arith.constant 0 : index
    %17 = vector.load %arg9[%c0_19, %c0_20] : memref<128x384xbf16, #tpu.memory_space<vmem>>, vector<128x384xbf16>
    %cst_21 = arith.constant dense<0.000000e+00> : vector<16x384xf32>
    %18 = tpu.matmul %4, %17, %cst_21 {dimension_numbers = #tpu.dot_dimension_numbers<[1], [0], [0], [1], [0, 0, 1, 1], [], []>} : vector<16x128xbf16>, vector<128x384xbf16>, vector<16x384xf32> -> vector<16x384xf32>
    %c0_22 = arith.constant 0 : index
    %c0_23 = arith.constant 0 : index
    %19 = vector.load %arg10[%c0_22, %c0_23] : memref<128x256xbf16, #tpu.memory_space<vmem>>, vector<128x256xbf16>
    %cst_24 = arith.constant dense<0.000000e+00> : vector<16x256xf32>
    %20 = tpu.matmul %5, %19, %cst_24 {dimension_numbers = #tpu.dot_dimension_numbers<[1], [0], [0], [1], [0, 0, 1, 1], [], []>} : vector<16x128xbf16>, vector<128x256xbf16>, vector<16x256xf32> -> vector<16x256xf32>
    %c0_25 = arith.constant 0 : index
    %c0_26 = arith.constant 0 : index
    %21 = vector.load %arg11[%c0_25, %c0_26] : memref<128x128xbf16, #tpu.memory_space<vmem>>, vector<128x128xbf16>
    %cst_27 = arith.constant dense<0.000000e+00> : vector<16x128xf32>
    %22 = tpu.matmul %0, %21, %cst_27 {dimension_numbers = #tpu.dot_dimension_numbers<[1], [0], [0], [1], [0, 0, 1, 1], [], []>} : vector<16x128xbf16>, vector<128x128xbf16>, vector<16x128xf32> -> vector<16x128xf32>
    %c0_28 = arith.constant 0 : index
    %c0_29 = arith.constant 0 : index
    %23 = vector.load %arg11[%c0_28, %c0_29] : memref<128x128xbf16, #tpu.memory_space<vmem>>, vector<128x128xbf16>
    %cst_30 = arith.constant dense<0.000000e+00> : vector<16x128xf32>
    %24 = tpu.matmul %1, %23, %cst_30 {dimension_numbers = #tpu.dot_dimension_numbers<[1], [0], [0], [1], [0, 0, 1, 1], [], []>} : vector<16x128xbf16>, vector<128x128xbf16>, vector<16x128xf32> -> vector<16x128xf32>
    %c0_31 = arith.constant 0 : index
    %c0_32 = arith.constant 0 : index
    %25 = vector.load %arg11[%c0_31, %c0_32] : memref<128x128xbf16, #tpu.memory_space<vmem>>, vector<128x128xbf16>
    %cst_33 = arith.constant dense<0.000000e+00> : vector<16x128xf32>
    %26 = tpu.matmul %2, %25, %cst_33 {dimension_numbers = #tpu.dot_dimension_numbers<[1], [0], [0], [1], [0, 0, 1, 1], [], []>} : vector<16x128xbf16>, vector<128x128xbf16>, vector<16x128xf32> -> vector<16x128xf32>
    %27 = vector.extract_strided_slice %16 {offsets = [0, 0], sizes = [16, 128], strides = [1, 1]} : vector<16x256xf32> to vector<16x128xf32>
    %28 = vector.extract_strided_slice %16 {offsets = [0, 128], sizes = [16, 128], strides = [1, 1]} : vector<16x256xf32> to vector<16x128xf32>
    %29 = vector.extract_strided_slice %18 {offsets = [0, 0], sizes = [16, 128], strides = [1, 1]} : vector<16x384xf32> to vector<16x128xf32>
    %30 = vector.extract_strided_slice %18 {offsets = [0, 128], sizes = [16, 128], strides = [1, 1]} : vector<16x384xf32> to vector<16x128xf32>
    %31 = vector.extract_strided_slice %18 {offsets = [0, 256], sizes = [16, 128], strides = [1, 1]} : vector<16x384xf32> to vector<16x128xf32>
    %32 = vector.extract_strided_slice %20 {offsets = [0, 0], sizes = [16, 128], strides = [1, 1]} : vector<16x256xf32> to vector<16x128xf32>
    %33 = vector.extract_strided_slice %20 {offsets = [0, 128], sizes = [16, 128], strides = [1, 1]} : vector<16x256xf32> to vector<16x128xf32>
    %34 = arith.addf %27, %30 : vector<16x128xf32>
    %35 = vector.broadcast %13 : vector<1x128xf32> to vector<16x128xf32>
    %36 = arith.addf %34, %35 : vector<16x128xf32>
    %37 = arith.addf %27, %32 : vector<16x128xf32>
    %38 = vector.broadcast %13 : vector<1x128xf32> to vector<16x128xf32>
    %39 = arith.addf %37, %38 : vector<16x128xf32>
    %40 = arith.addf %29, %32 : vector<16x128xf32>
    %41 = vector.broadcast %13 : vector<1x128xf32> to vector<16x128xf32>
    %42 = arith.addf %40, %41 : vector<16x128xf32>
    %43 = arith.extf %3 : vector<16x128xbf16> to vector<16x128xf32>
    %44 = arith.extf %4 : vector<16x128xbf16> to vector<16x128xf32>
    %45 = arith.mulf %43, %44 : vector<16x128xf32>
    %cst_34 = arith.constant dense<0.000000e+00> : vector<16xf32>
    %46 = vector.multi_reduction <add>, %45, %cst_34 [1] : vector<16x128xf32> to vector<16xf32>
    %47 = vector.shape_cast %46 : vector<16xf32> to vector<16x1xf32>
    %48 = arith.extf %3 : vector<16x128xbf16> to vector<16x128xf32>
    %49 = arith.extf %5 : vector<16x128xbf16> to vector<16x128xf32>
    %50 = arith.mulf %48, %49 : vector<16x128xf32>
    %cst_35 = arith.constant dense<0.000000e+00> : vector<16xf32>
    %51 = vector.multi_reduction <add>, %50, %cst_35 [1] : vector<16x128xf32> to vector<16xf32>
    %52 = vector.shape_cast %51 : vector<16xf32> to vector<16x1xf32>
    %53 = arith.extf %4 : vector<16x128xbf16> to vector<16x128xf32>
    %54 = arith.extf %5 : vector<16x128xbf16> to vector<16x128xf32>
    %55 = arith.mulf %53, %54 : vector<16x128xf32>
    %cst_36 = arith.constant dense<0.000000e+00> : vector<16xf32>
    %56 = vector.multi_reduction <add>, %55, %cst_36 [1] : vector<16x128xf32> to vector<16xf32>
    %57 = vector.shape_cast %56 : vector<16xf32> to vector<16x1xf32>
    %58 = arith.addf %10, %11 : vector<16x1xf32>
    %cst_37 = arith.constant 5.000000e-01 : f32
    %59 = vector.broadcast %cst_37 : f32 to vector<16x1xf32>
    %60 = arith.addf %47, %59 : vector<16x1xf32>
    %61 = arith.divf %58, %60 : vector<16x1xf32>
    %62 = arith.addf %10, %12 : vector<16x1xf32>
    %cst_38 = arith.constant 5.000000e-01 : f32
    %63 = vector.broadcast %cst_38 : f32 to vector<16x1xf32>
    %64 = arith.addf %52, %63 : vector<16x1xf32>
    %65 = arith.divf %62, %64 : vector<16x1xf32>
    %66 = arith.addf %11, %12 : vector<16x1xf32>
    %cst_39 = arith.constant 5.000000e-01 : f32
    %67 = vector.broadcast %cst_39 : f32 to vector<16x1xf32>
    %68 = arith.addf %57, %67 : vector<16x1xf32>
    %69 = arith.divf %66, %68 : vector<16x1xf32>
    %70 = arith.addf %65, %69 : vector<16x1xf32>
    %71 = arith.divf %61, %70 : vector<16x1xf32>
    %72 = arith.addf %61, %69 : vector<16x1xf32>
    %73 = arith.divf %65, %72 : vector<16x1xf32>
    %74 = arith.addf %61, %65 : vector<16x1xf32>
    %75 = arith.divf %69, %74 : vector<16x1xf32>
    %76 = arith.addf %22, %33 : vector<16x128xf32>
    %77 = vector.broadcast %14 : vector<1x128xf32> to vector<16x128xf32>
    %78 = arith.addf %76, %77 : vector<16x128xf32>
    %79 = arith.addf %24, %31 : vector<16x128xf32>
    %80 = vector.broadcast %14 : vector<1x128xf32> to vector<16x128xf32>
    %81 = arith.addf %79, %80 : vector<16x128xf32>
    %82 = arith.addf %26, %28 : vector<16x128xf32>
    %83 = vector.broadcast %14 : vector<1x128xf32> to vector<16x128xf32>
    %84 = arith.addf %82, %83 : vector<16x128xf32>
    %85 = arith.extf %0 : vector<16x128xbf16> to vector<16x128xf32>
    %86 = arith.extf %5 : vector<16x128xbf16> to vector<16x128xf32>
    %87 = arith.mulf %85, %86 : vector<16x128xf32>
    %cst_40 = arith.constant dense<0.000000e+00> : vector<16xf32>
    %88 = vector.multi_reduction <add>, %87, %cst_40 [1] : vector<16x128xf32> to vector<16xf32>
    %89 = vector.shape_cast %88 : vector<16xf32> to vector<16x1xf32>
    %90 = arith.extf %1 : vector<16x128xbf16> to vector<16x128xf32>
    %91 = arith.extf %4 : vector<16x128xbf16> to vector<16x128xf32>
    %92 = arith.mulf %90, %91 : vector<16x128xf32>
    %cst_41 = arith.constant dense<0.000000e+00> : vector<16xf32>
    %93 = vector.multi_reduction <add>, %92, %cst_41 [1] : vector<16x128xf32> to vector<16xf32>
    %94 = vector.shape_cast %93 : vector<16xf32> to vector<16x1xf32>
    %95 = arith.extf %2 : vector<16x128xbf16> to vector<16x128xf32>
    %96 = arith.extf %3 : vector<16x128xbf16> to vector<16x128xf32>
    %97 = arith.mulf %95, %96 : vector<16x128xf32>
    %cst_42 = arith.constant dense<0.000000e+00> : vector<16xf32>
    %98 = vector.multi_reduction <add>, %97, %cst_42 [1] : vector<16x128xf32> to vector<16xf32>
    %99 = vector.shape_cast %98 : vector<16xf32> to vector<16x1xf32>
    %100 = arith.addf %7, %12 : vector<16x1xf32>
    %cst_43 = arith.constant 5.000000e-01 : f32
    %101 = vector.broadcast %cst_43 : f32 to vector<16x1xf32>
    %102 = arith.addf %89, %101 : vector<16x1xf32>
    %103 = arith.divf %100, %102 : vector<16x1xf32>
    %104 = arith.addf %8, %11 : vector<16x1xf32>
    %cst_44 = arith.constant 5.000000e-01 : f32
    %105 = vector.broadcast %cst_44 : f32 to vector<16x1xf32>
    %106 = arith.addf %94, %105 : vector<16x1xf32>
    %107 = arith.divf %104, %106 : vector<16x1xf32>
    %108 = arith.addf %9, %10 : vector<16x1xf32>
    %cst_45 = arith.constant 5.000000e-01 : f32
    %109 = vector.broadcast %cst_45 : f32 to vector<16x1xf32>
    %110 = arith.addf %99, %109 : vector<16x1xf32>
    %111 = arith.divf %108, %110 : vector<16x1xf32>
    %112 = arith.addf %107, %111 : vector<16x1xf32>
    %113 = arith.divf %103, %112 : vector<16x1xf32>
    %114 = arith.addf %103, %111 : vector<16x1xf32>
    %115 = arith.divf %107, %114 : vector<16x1xf32>
    %116 = arith.addf %103, %107 : vector<16x1xf32>
    %117 = arith.divf %111, %116 : vector<16x1xf32>
    %118 = vector.broadcast %113 : vector<16x1xf32> to vector<16x128xf32>
    %119 = arith.mulf %118, %78 : vector<16x128xf32>
    %120 = vector.broadcast %115 : vector<16x1xf32> to vector<16x128xf32>
    %121 = arith.mulf %120, %81 : vector<16x128xf32>
    %122 = arith.addf %119, %121 : vector<16x128xf32>
    %123 = vector.broadcast %117 : vector<16x1xf32> to vector<16x128xf32>
    %124 = arith.mulf %123, %84 : vector<16x128xf32>
    %125 = arith.addf %122, %124 : vector<16x128xf32>
    %126 = vector.broadcast %71 : vector<16x1xf32> to vector<16x128xf32>
    %127 = arith.mulf %126, %36 : vector<16x128xf32>
    %128 = arith.addf %125, %127 : vector<16x128xf32>
    %129 = vector.broadcast %73 : vector<16x1xf32> to vector<16x128xf32>
    %130 = arith.mulf %129, %39 : vector<16x128xf32>
    %131 = arith.addf %128, %130 : vector<16x128xf32>
    %132 = vector.broadcast %75 : vector<16x1xf32> to vector<16x128xf32>
    %133 = arith.mulf %132, %42 : vector<16x128xf32>
    %134 = arith.addf %131, %133 : vector<16x128xf32>
    %c0_46 = arith.constant 0 : index
    %c0_47 = arith.constant 0 : index
    %135 = vector.load %arg14[%c0_46, %c0_47] : memref<16x128xf32, #tpu.memory_space<vmem>>, vector<16x128xf32>
    tpu.vector_store %arg14[%c0_46, %c0_47], %134 {strides = array<i32>} : memref<16x128xf32, #tpu.memory_space<vmem>>, vector<16x128xf32>,
    return
  }
  func.func @transform_0(%arg0: i32) -> (i32, i32) {
    %c0_i32 = arith.constant 0 : i32
    %c0_i32_0 = arith.constant 0 : i32
    return %arg0, %c0_i32 : i32, i32
  }
  func.func @transform_1(%arg0: i32) -> (i32, i32) {
    %c0_i32 = arith.constant 0 : i32
    %c0_i32_0 = arith.constant 0 : i32
    return %arg0, %c0_i32 : i32, i32
  }
  func.func @transform_2(%arg0: i32) -> (i32, i32) {
    %c0_i32 = arith.constant 0 : i32
    %c0_i32_0 = arith.constant 0 : i32
    return %arg0, %c0_i32 : i32, i32
  }
  func.func @transform_3(%arg0: i32) -> (i32, i32) {
    %c0_i32 = arith.constant 0 : i32
    %c0_i32_0 = arith.constant 0 : i32
    return %arg0, %c0_i32 : i32, i32
  }
  func.func @transform_4(%arg0: i32) -> (i32, i32) {
    %c0_i32 = arith.constant 0 : i32
    %c0_i32_0 = arith.constant 0 : i32
    return %arg0, %c0_i32 : i32, i32
  }
  func.func @transform_5(%arg0: i32) -> (i32, i32) {
    %c0_i32 = arith.constant 0 : i32
    %c0_i32_0 = arith.constant 0 : i32
    return %arg0, %c0_i32 : i32, i32
  }
  func.func @transform_6(%arg0: i32) -> (i32, i32) {
    %c0_i32 = arith.constant 0 : i32
    %c0_i32_0 = arith.constant 0 : i32
    return %arg0, %c0_i32 : i32, i32
  }
  func.func @transform_7(%arg0: i32) -> (i32, i32) {
    %c0_i32 = arith.constant 0 : i32
    %c0_i32_0 = arith.constant 0 : i32
    %c0_i32_1 = arith.constant 0 : i32
    return %c0_i32, %c0_i32_0 : i32, i32
  }
  func.func @transform_8(%arg0: i32) -> (i32, i32) {
    %c0_i32 = arith.constant 0 : i32
    %c0_i32_0 = arith.constant 0 : i32
    %c0_i32_1 = arith.constant 0 : i32
    return %c0_i32, %c0_i32_0 : i32, i32
  }
  func.func @transform_9(%arg0: i32) -> (i32, i32) {
    %c0_i32 = arith.constant 0 : i32
    %c0_i32_0 = arith.constant 0 : i32
    %c0_i32_1 = arith.constant 0 : i32
    return %c0_i32, %c0_i32_0 : i32, i32
  }
  func.func @transform_10(%arg0: i32) -> (i32, i32) {
    %c0_i32 = arith.constant 0 : i32
    %c0_i32_0 = arith.constant 0 : i32
    %c0_i32_1 = arith.constant 0 : i32
    return %c0_i32, %c0_i32_0 : i32, i32
  }
  func.func @transform_11(%arg0: i32) -> (i32, i32) {
    %c0_i32 = arith.constant 0 : i32
    %c0_i32_0 = arith.constant 0 : i32
    %c0_i32_1 = arith.constant 0 : i32
    return %c0_i32, %c0_i32_0 : i32, i32
  }
  func.func @transform_12(%arg0: i32) -> (i32, i32) {
    %c0_i32 = arith.constant 0 : i32
    %c0_i32_0 = arith.constant 0 : i32
    %c0_i32_1 = arith.constant 0 : i32
    return %c0_i32, %c0_i32_0 : i32, i32
  }
  func.func @transform_13(%arg0: i32) -> (i32, i32) {
    %c0_i32 = arith.constant 0 : i32
    %c0_i32_0 = arith.constant 0 : i32
    return %arg0, %c0_i32 : i32, i32
  }
}

</mosaic_0001>

<llo_original>
// kernel: tpu_custom_call.1
$region0: #{tpu_custom_call.1}
  #allocation0 [shape = 'u32[]', space=smem, size = 0x4, offset = 0x4, fixed_abs, tag = 'smem constant byte address 0x4 - core index']
  #allocation1 [shape = 'u32[144,128]{1,0:T(1,128)}', space=vmem, size = 0x12000, scoped, tag = 'internal scratch']
  %s0 = inlined_call_operand.vmem [shape: bf16[16,128], index: 0, kind: input, shape index: {}]
  %s1 = inlined_call_operand.vmem [shape: bf16[16,128], index: 1, kind: input, shape index: {}]
  %s2 = inlined_call_operand.vmem [shape: bf16[16,128], index: 2, kind: input, shape index: {}]
  %s3 = inlined_call_operand.hbm [shape: bf16[16,128], index: 3, kind: input, shape index: {}]
  %s4 = inlined_call_operand.hbm [shape: bf16[16,128], index: 4, kind: input, shape index: {}]
  %s5 = inlined_call_operand.hbm [shape: bf16[16,128], index: 5, kind: input, shape index: {}]
  %s6 = inlined_call_operand.vmem [shape: f32[16,8], index: 6, kind: input, shape index: {}]
  %s7 = inlined_call_operand.hbm [shape: bf16[128,256], index: 7, kind: input, shape index: {}]
  %s8 = inlined_call_operand.hbm [shape: bf16[128,384], index: 8, kind: input, shape index: {}]
  %s9 = inlined_call_operand.hbm [shape: bf16[128,256], index: 9, kind: input, shape index: {}]
  %s10 = inlined_call_operand.hbm [shape: bf16[128,128], index: 10, kind: input, shape index: {}]
  %s11 = inlined_call_operand.vmem [shape: f32[1,128], index: 11, kind: input, shape index: {}]
  %s12 = inlined_call_operand.vmem [shape: f32[1,128], index: 12, kind: input, shape index: {}]
  %s13 = inlined_call_operand.hbm [shape: f32[16,128], index: 13, kind: output, shape index: {}]
  %s14 = sld [smem:[#allocation0]]
  $region90: #{tpu_custom_call.1} parent=0
    _
  %s16 = ssub.s32 1, %s14
  %s17 = scalar_select 0, %s16, %s14
  $region1: #{tpu_custom_call.1} parent=0
    #allocation2 [shape = 'u8[4096]{0}', space=vmem, size = 0x1000, scoped, tag = 'input window, operand 3, single buffered']
    #allocation3 [shape = 's32[1]{0}', space=sflag, size = 0x4, scoped, tag = 'scoped memory for tpu_custom_call.1']
    #allocation4 [shape = 's32[1]{0}', space=sflag, size = 0x4, scoped, tag = 'scoped memory for tpu_custom_call.1']
    #allocation5 [shape = 'u8[4096]{0}', space=vmem, size = 0x1000, scoped, tag = 'input window, operand 4, single buffered']
    #allocation6 [shape = 's32[1]{0}', space=sflag, size = 0x4, scoped, tag = 'scoped memory for tpu_custom_call.1']
    #allocation7 [shape = 'u8[4096]{0}', space=vmem, size = 0x1000, scoped, tag = 'input window, operand 5, single buffered']
    #allocation8 [shape = 'u8[65536]{0}', space=vmem, size = 0x10000, scoped, tag = 'input window, operand 7, single buffered']
    #allocation9 [shape = 's32[1]{0}', space=sflag, size = 0x4, scoped, tag = 'scoped memory for tpu_custom_call.1']
    #allocation10 [shape = 'u8[98304]{0}', space=vmem, size = 0x18000, scoped, tag = 'input window, operand 8, single buffered']
    #allocation11 [shape = 'u8[65536]{0}', space=vmem, size = 0x10000, scoped, tag = 'input window, operand 9, single buffered']
    #allocation12 [shape = 's32[1]{0}', space=sflag, size = 0x4, scoped, tag = 'scoped memory for tpu_custom_call.1']
    #allocation13 [shape = 'u8[32768]{0}', space=vmem, size = 0x8000, scoped, tag = 'input window, operand 10, single buffered']
    #allocation14 [shape = 'u8[8192]{0}', space=vmem, size = 0x2000, scoped, tag = 'output window, operand 0, single buffered']
    %18 = vsyncpa [#allocation3], 0
    %19 = vsyncpa [#allocation6], 0
    %20 = vsyncpa [#allocation9], 0
    %21 = vsyncpa [#allocation12], 0
    %22 = vsyncpa [#allocation4], 0
    // Predicated region
    $region2: #{tpu_custom_call.1} parent=1 // pred_check
      _
    $region3: #{tpu_custom_call.1} parent=1 // pred_check_branch
      %24 = sbr.rel (0) target = $region5
    $region4: #{tpu_custom_call.1} parent=1 // pred_region
      _
    $region5: #{tpu_custom_call.1} parent=1 // pred_fallthru
      _
    // Predicated region
    $region6: #{tpu_custom_call.1} parent=1 // pred_check
      _
    $region7: #{tpu_custom_call.1} parent=1 // pred_check_branch
      %26 = sbr.rel (0) target = $region9
    $region8: #{tpu_custom_call.1} parent=1 // pred_region
      _
    $region9: #{tpu_custom_call.1} parent=1 // pred_fallthru
      _
    // Predicated region
    $region10: #{tpu_custom_call.1} parent=1 // pred_check
      _
    $region11: #{tpu_custom_call.1} parent=1 // pred_check_branch
      %28 = sbr.rel (0) target = $region13
    $region12: #{tpu_custom_call.1} parent=1 // pred_region
      _
    $region13: #{tpu_custom_call.1} parent=1 // pred_fallthru
      _
    // Predicated region
    $region14: #{tpu_custom_call.1} parent=1 // pred_check
      _
    $region15: #{tpu_custom_call.1} parent=1 // pred_check_branch
      %30 = sbr.rel (0) target = $region17
    $region16: #{tpu_custom_call.1} parent=1 // pred_region
      %s32 = ssub.s32 128, 128
      %33 = vsyncadd [#allocation3], %s32
      %s34 = sshll.u32 [#allocation2], 4
      %s35 = int_to_ptr.vmem [resolvable:$true] %s34
      %40 = dma.hbm_to_vmem [thread:$0]  %s3, 128, %s35, [#allocation3], 64, 64, 4
    $region17: #{tpu_custom_call.1} parent=1 // pred_fallthru
      _
    // Predicated region
    $region18: #{tpu_custom_call.1} parent=1 // pred_check
      _
    $region19: #{tpu_custom_call.1} parent=1 // pred_check_branch
      %42 = sbr.rel (0) target = $region21
    $region20: #{tpu_custom_call.1} parent=1 // pred_region
      %s44 = ssub.s32 128, 128
      %45 = vsyncadd [#allocation6], %s44
      %s46 = sshll.u32 [#allocation5], 4
      %s47 = int_to_ptr.vmem [resolvable:$true] %s46
      %52 = dma.hbm_to_vmem [thread:$0]  %s4, 128, %s47, [#allocation6], 64, 64, 4
    $region21: #{tpu_custom_call.1} parent=1 // pred_fallthru
      _
    // Predicated region
    $region22: #{tpu_custom_call.1} parent=1 // pred_check
      _
    $region23: #{tpu_custom_call.1} parent=1 // pred_check_branch
      %54 = sbr.rel (0) target = $region25
    $region24: #{tpu_custom_call.1} parent=1 // pred_region
      %s56 = ssub.s32 128, 128
      %57 = vsyncadd [#allocation6], %s56
      %s58 = sshll.u32 [#allocation7], 4
      %s59 = int_to_ptr.vmem [resolvable:$true] %s58
      %64 = dma.hbm_to_vmem [thread:$0]  %s5, 128, %s59, [#allocation6], 64, 64, 4
    $region25: #{tpu_custom_call.1} parent=1 // pred_fallthru
      _
    // Predicated region
    $region26: #{tpu_custom_call.1} parent=1 // pred_check
      _
    $region27: #{tpu_custom_call.1} parent=1 // pred_check_branch
      %66 = sbr.rel (0) target = $region29
    $region28: #{tpu_custom_call.1} parent=1 // pred_region
      _
    $region29: #{tpu_custom_call.1} parent=1 // pred_fallthru
      _
    // Predicated region
    $region30: #{tpu_custom_call.1} parent=1 // pred_check
      _
    $region31: #{tpu_custom_call.1} parent=1 // pred_check_branch
      %68 = sbr.rel (0) target = $region33
    $region32: #{tpu_custom_call.1} parent=1 // pred_region
      %s70 = ssub.s32 2048, 2048
      %71 = vsyncadd [#allocation9], %s70
      %s72 = sshll.u32 [#allocation8], 4
      %s73 = int_to_ptr.vmem [resolvable:$true] %s72
      %78 = dma.hbm_to_vmem [thread:$0]  %s7, 2048, %s73, [#allocation9], 128, 128, 8
    $region33: #{tpu_custom_call.1} parent=1 // pred_fallthru
      _
    // Predicated region
    $region34: #{tpu_custom_call.1} parent=1 // pred_check
      _
    $region35: #{tpu_custom_call.1} parent=1 // pred_check_branch
      %80 = sbr.rel (0) target = $region37
    $region36: #{tpu_custom_call.1} parent=1 // pred_region
      %s82 = ssub.s32 3072, 3072
      %83 = vsyncadd [#allocation9], %s82
      %s84 = sshll.u32 [#allocation10], 4
      %s85 = int_to_ptr.vmem [resolvable:$true] %s84
      %90 = dma.hbm_to_vmem [thread:$0]  %s8, 3072, %s85, [#allocation9], 192, 192, 12
    $region37: #{tpu_custom_call.1} parent=1 // pred_fallthru
      _
    // Predicated region
    $region38: #{tpu_custom_call.1} parent=1 // pred_check
      _
    $region39: #{tpu_custom_call.1} parent=1 // pred_check_branch
      %92 = sbr.rel (0) target = $region41
    $region40: #{tpu_custom_call.1} parent=1 // pred_region
      %s94 = ssub.s32 2048, 2048
      %95 = vsyncadd [#allocation12], %s94
      %s96 = sshll.u32 [#allocation11], 4
      %s97 = int_to_ptr.vmem [resolvable:$true] %s96
      %102 = dma.hbm_to_vmem [thread:$0]  %s9, 2048, %s97, [#allocation12], 128, 128, 8
    $region41: #{tpu_custom_call.1} parent=1 // pred_fallthru
      _
    // Predicated region
    $region42: #{tpu_custom_call.1} parent=1 // pred_check
      _
    $region43: #{tpu_custom_call.1} parent=1 // pred_check_branch
      %104 = sbr.rel (0) target = $region45
    $region44: #{tpu_custom_call.1} parent=1 // pred_region
      %s106 = ssub.s32 1024, 1024
      %107 = vsyncadd [#allocation12], %s106
      %s108 = sshll.u32 [#allocation13], 4
      %s109 = int_to_ptr.vmem [resolvable:$true] %s108
      %114 = dma.hbm_to_vmem [thread:$0]  %s10, 1024, %s109, [#allocation12], 64, 64, 4
    $region45: #{tpu_custom_call.1} parent=1 // pred_fallthru
      _
    // Predicated region
    $region46: #{tpu_custom_call.1} parent=1 // pred_check
      _
    $region47: #{tpu_custom_call.1} parent=1 // pred_check_branch
      %116 = sbr.rel (0) target = $region49
    $region48: #{tpu_custom_call.1} parent=1 // pred_region
      _
    $region49: #{tpu_custom_call.1} parent=1 // pred_fallthru
      _
    // Predicated region
    $region50: #{tpu_custom_call.1} parent=1 // pred_check
      _
    $region51: #{tpu_custom_call.1} parent=1 // pred_check_branch
      %118 = sbr.rel (0) target = $region53
    $region52: #{tpu_custom_call.1} parent=1 // pred_region
      _
    $region53: #{tpu_custom_call.1} parent=1 // pred_fallthru
      _
    // Predicated region
    $region54: #{tpu_custom_call.1} parent=1 // pred_check
      _
    $region55: #{tpu_custom_call.1} parent=1 // pred_check_branch
      %120 = sbr.rel (0) target = $region57
    $region56: #{tpu_custom_call.1} parent=1 // pred_region
      %121 = dma.done [#allocation3], 128
    $region57: #{tpu_custom_call.1} parent=1 // pred_fallthru
      _
    // Predicated region
    $region58: #{tpu_custom_call.1} parent=1 // pred_check
      _
    $region59: #{tpu_custom_call.1} parent=1 // pred_check_branch
      %123 = sbr.rel (0) target = $region61
    $region60: #{tpu_custom_call.1} parent=1 // pred_region
      %124 = dma.done [#allocation6], 128
    $region61: #{tpu_custom_call.1} parent=1 // pred_fallthru
      _
    // Predicated region
    $region62: #{tpu_custom_call.1} parent=1 // pred_check
      _
    $region63: #{tpu_custom_call.1} parent=1 // pred_check_branch
      %126 = sbr.rel (0) target = $region65
    $region64: #{tpu_custom_call.1} parent=1 // pred_region
      %127 = dma.done [#allocation6], 128
    $region65: #{tpu_custom_call.1} parent=1 // pred_fallthru
      _
    // Predicated region
    $region66: #{tpu_custom_call.1} parent=1 // pred_check
      _
    $region67: #{tpu_custom_call.1} parent=1 // pred_check_branch
      %129 = sbr.rel (0) target = $region69
    $region68: #{tpu_custom_call.1} parent=1 // pred_region
      %130 = dma.done [#allocation9], 2048
    $region69: #{tpu_custom_call.1} parent=1 // pred_fallthru
      _
    // Predicated region
    $region70: #{tpu_custom_call.1} parent=1 // pred_check
      _
    $region71: #{tpu_custom_call.1} parent=1 // pred_check_branch
      %132 = sbr.rel (0) target = $region73
    $region72: #{tpu_custom_call.1} parent=1 // pred_region
      %133 = dma.done [#allocation9], 3072
    $region73: #{tpu_custom_call.1} parent=1 // pred_fallthru
      _
    // Predicated region
    $region74: #{tpu_custom_call.1} parent=1 // pred_check
      _
    $region75: #{tpu_custom_call.1} parent=1 // pred_check_branch
      %135 = sbr.rel (0) target = $region77
    $region76: #{tpu_custom_call.1} parent=1 // pred_region
      %136 = dma.done [#allocation12], 2048
    $region77: #{tpu_custom_call.1} parent=1 // pred_fallthru
      _
    // Predicated region
    $region78: #{tpu_custom_call.1} parent=1 // pred_check
      _
    $region79: #{tpu_custom_call.1} parent=1 // pred_check_branch
      %138 = sbr.rel (0) target = $region81
    $region80: #{tpu_custom_call.1} parent=1 // pred_region
      %139 = dma.done [#allocation12], 1024
    $region81: #{tpu_custom_call.1} parent=1 // pred_fallthru
      _
    %v141 = vld [vmem:[%s0] sm:$0xf]
    %v142 = vld [vmem:[%s0 + $0x4] sm:$0xf]
    %v143 = vld [vmem:[%s1] sm:$0xf]
    %v144 = vld [vmem:[%s1 + $0x4] sm:$0xf]
    %v145 = vld [vmem:[%s2] sm:$0xf]
    %v146 = vld [vmem:[%s2 + $0x4] sm:$0xf]
    %v147 = vld [vmem:[#allocation2] sm:$0xf]
    %v148 = vld [vmem:[#allocation2 + $0x4] sm:$0xf]
    %v149 = vld [vmem:[#allocation5] sm:$0xf]
    %v150 = vld [vmem:[#allocation5 + $0x4] sm:$0xf]
    %v151 = vld [vmem:[#allocation7] sm:$0xf]
    %v152 = vld [vmem:[#allocation7 + $0x4] sm:$0xf]
    %v153 = vld [vmem:[%s6] sm:$0xff]
    %v154 = vld [vmem:[%s6 + $0x8] sm:$0xff]
    %v155 = vld [vmem:[%s11] sm:$0x1]
    %v156 = vld [vmem:[%s12] sm:$0x1]
    %v157 = vld [vmem:[#allocation8] sm:$0xff]
    %v158 = vld [vmem:[#allocation8 + $0x8] sm:$0xff]
    %v159 = vld [vmem:[#allocation8 + $0x10] sm:$0xff]
    %v160 = vld [vmem:[#allocation8 + $0x18] sm:$0xff]
    %v161 = vld [vmem:[#allocation8 + $0x20] sm:$0xff]
    %v162 = vld [vmem:[#allocation8 + $0x28] sm:$0xff]
    %v163 = vld [vmem:[#allocation8 + $0x30] sm:$0xff]
    %v164 = vld [vmem:[#allocation8 + $0x38] sm:$0xff]
    %v165 = vld [vmem:[#allocation8 + $0x40] sm:$0xff]
    %v166 = vld [vmem:[#allocation8 + $0x48] sm:$0xff]
    %v167 = vld [vmem:[#allocation8 + $0x50] sm:$0xff]
    %v168 = vld [vmem:[#allocation8 + $0x58] sm:$0xff]
    %v169 = vld [vmem:[#allocation8 + $0x60] sm:$0xff]
    %v170 = vld [vmem:[#allocation8 + $0x68] sm:$0xff]
    %v171 = vld [vmem:[#allocation8 + $0x70] sm:$0xff]
    %v172 = vld [vmem:[#allocation8 + $0x78] sm:$0xff]
    %v175 = vunpack.c.l.b16 %v147
    %v176 = vunpack.c.l.b16 %v148
    %v177 = vpack.c.b16 %v176, %v175
    %v195 = vunpack.c.l.b16 %v157
    %v196 = vunpack.c.h.b16 %v157
    %v197 = vunpack.c.l.b16 %v158
    %v198 = vunpack.c.h.b16 %v158
    %v199 = vunpack.c.l.b16 %v159
    %v200 = vunpack.c.h.b16 %v159
    %v201 = vunpack.c.l.b16 %v160
    %v202 = vunpack.c.h.b16 %v160
    %v203 = vunpack.c.l.b16 %v161
    %v204 = vunpack.c.h.b16 %v161
    %v205 = vunpack.c.l.b16 %v162
    %v206 = vunpack.c.h.b16 %v162
    %v207 = vunpack.c.l.b16 %v163
    %v208 = vunpack.c.h.b16 %v163
    %v209 = vunpack.c.l.b16 %v164
    %v210 = vunpack.c.h.b16 %v164
    %v211 = vunpack.c.l.b16 %v165
    %v212 = vunpack.c.h.b16 %v165
    %v213 = vunpack.c.l.b16 %v166
    %v214 = vunpack.c.h.b16 %v166
    %v215 = vunpack.c.l.b16 %v167
    %v216 = vunpack.c.h.b16 %v167
    %v217 = vunpack.c.l.b16 %v168
    %v218 = vunpack.c.h.b16 %v168
    %v219 = vunpack.c.l.b16 %v169
    %v220 = vunpack.c.h.b16 %v169
    %v221 = vunpack.c.l.b16 %v170
    %v222 = vunpack.c.h.b16 %v170
    %v223 = vunpack.c.l.b16 %v171
    %v224 = vunpack.c.h.b16 %v171
    %v225 = vunpack.c.l.b16 %v172
    %v226 = vunpack.c.h.b16 %v172
    %v227 = vpack.c.b16 %v197, %v195
    %v228 = vpack.c.b16 %v198, %v196
    %v229 = vpack.c.b16 %v201, %v199
    %v230 = vpack.c.b16 %v202, %v200
    %v231 = vpack.c.b16 %v205, %v203
    %v232 = vpack.c.b16 %v206, %v204
    %v233 = vpack.c.b16 %v209, %v207
    %v234 = vpack.c.b16 %v210, %v208
    %v235 = vpack.c.b16 %v213, %v211
    %v236 = vpack.c.b16 %v214, %v212
    %v237 = vpack.c.b16 %v217, %v215
    %v238 = vpack.c.b16 %v218, %v216
    %v239 = vpack.c.b16 %v221, %v219
    %v240 = vpack.c.b16 %v222, %v220
    %v241 = vpack.c.b16 %v225, %v223
    %v242 = vpack.c.b16 %v226, %v224
    %259 = vmatprep.subr.bf16.mxu0 %v242
    %260 = vmatpush1.bf16.msra.mxu0 %v241
    %261 = vmatprep.subr.bf16.mxu0 %v240
    %262 = vmatpush1.bf16.msra.mxu0 %v239
    %263 = vmatprep.subr.bf16.mxu0 %v238
    %264 = vmatpush1.bf16.msra.mxu0 %v237
    %265 = vmatprep.subr.bf16.mxu0 %v236
    %266 = vmatpush1.bf16.msra.mxu0 %v235
    %267 = vmatprep.subr.bf16.mxu0 %v234
    %268 = vmatpush1.bf16.msra.mxu0 %v233
    %269 = vmatprep.subr.bf16.mxu0 %v232
    %270 = vmatpush1.bf16.msra.mxu0 %v231
    %271 = vmatprep.subr.bf16.mxu0 %v230
    %272 = vmatpush1.bf16.msra.mxu0 %v229
    %273 = vmatprep.subr.bf16.mxu0 %v228
    %274 = vmatpush1.bf16.msra.mxu0 %v227
    %275 = vmatprep.subr.bf16.mxu0 0
    %276 = vmatpush2.bf16.msra.mxu0 0
    %277 = vmatprep.subr.bf16.mxu0 0
    %278 = vmatpush2.bf16.msra.mxu0 0
    %279 = vmatprep.subr.bf16.mxu0 0
    %280 = vmatpush2.bf16.msra.mxu0 0
    %281 = vmatprep.subr.bf16.mxu0 0
    %282 = vmatpush2.bf16.msra.mxu0 0
    %283 = vmatprep.subr.bf16.mxu0 0
    %284 = vmatpush2.bf16.msra.mxu0 0
    %285 = vmatprep.subr.bf16.mxu0 0
    %286 = vmatpush2.bf16.msra.mxu0 0
    %287 = vmatprep.subr.bf16.mxu0 0
    %288 = vmatpush2.bf16.msra.mxu0 0
    %289 = vmatprep.subr.bf16.mxu0 0
    %290 = vmatpush2.bf16.msra.mxu0 0
    %291 = vmatprep.mubr.bf16.mxu0 0
    %292 = vmatmul.mubr.bf16.gmra.mxu0 %v177
    %v293 = vpop.f32.mrf.mxu0
    %v294 = vadd.f32 0.0, %v293
    %v295 = vpop.f32.mrf.mxu0
    %v296 = vadd.f32 0.0, %v295
    %v297 = vpop.f32.mrf.mxu0
    %v298 = vadd.f32 0.0, %v297
    %v299 = vpop.f32.mrf.mxu0
    %v300 = vadd.f32 0.0, %v299
    %301 = vdwg.mxu0
    %v302 = vld [vmem:[#allocation10] sm:$0xff]
    %v303 = vld [vmem:[#allocation10 + $0x8] sm:$0xf]
    %v304 = vld [vmem:[#allocation10 + $0xc] sm:$0xff]
    %v305 = vld [vmem:[#allocation10 + $0x14] sm:$0xf]
    %v306 = vld [vmem:[#allocation10 + $0x18] sm:$0xff]
    %v307 = vld [vmem:[#allocation10 + $0x20] sm:$0xf]
    %v308 = vld [vmem:[#allocation10 + $0x24] sm:$0xff]
    %v309 = vld [vmem:[#allocation10 + $0x2c] sm:$0xf]
    %v310 = vld [vmem:[#allocation10 + $0x30] sm:$0xff]
    %v311 = vld [vmem:[#allocation10 + $0x38] sm:$0xf]
    %v312 = vld [vmem:[#allocation10 + $0x3c] sm:$0xff]
    %v313 = vld [vmem:[#allocation10 + $0x44] sm:$0xf]
    %v314 = vld [vmem:[#allocation10 + $0x48] sm:$0xff]
    %v315 = vld [vmem:[#allocation10 + $0x50] sm:$0xf]
    %v316 = vld [vmem:[#allocation10 + $0x54] sm:$0xff]
    %v317 = vld [vmem:[#allocation10 + $0x5c] sm:$0xf]
    %v318 = vld [vmem:[#allocation10 + $0x60] sm:$0xff]
    %v319 = vld [vmem:[#allocation10 + $0x68] sm:$0xf]
    %v320 = vld [vmem:[#allocation10 + $0x6c] sm:$0xff]
    %v321 = vld [vmem:[#allocation10 + $0x74] sm:$0xf]
    %v322 = vld [vmem:[#allocation10 + $0x78] sm:$0xff]
    %v323 = vld [vmem:[#allocation10 + $0x80] sm:$0xf]
    %v324 = vld [vmem:[#allocation10 + $0x84] sm:$0xff]
    %v325 = vld [vmem:[#allocation10 + $0x8c] sm:$0xf]
    %v326 = vld [vmem:[#allocation10 + $0x90] sm:$0xff]
    %v327 = vld [vmem:[#allocation10 + $0x98] sm:$0xf]
    %v328 = vld [vmem:[#allocation10 + $0x9c] sm:$0xff]
    %v329 = vld [vmem:[#allocation10 + $0xa4] sm:$0xf]
    %v330 = vld [vmem:[#allocation10 + $0xa8] sm:$0xff]
    %v331 = vld [vmem:[#allocation10 + $0xb0] sm:$0xf]
    %v332 = vld [vmem:[#allocation10 + $0xb4] sm:$0xff]
    %v333 = vld [vmem:[#allocation10 + $0xbc] sm:$0xf]
    %v336 = vunpack.c.l.b16 %v149
    %v337 = vunpack.c.l.b16 %v150
    %v338 = vpack.c.b16 %v337, %v336
    %v372 = vunpack.c.l.b16 %v302
    %v373 = vunpack.c.h.b16 %v302
    %v374 = vunpack.c.l.b16 %v303
    %v375 = vunpack.c.l.b16 %v304
    %v376 = vunpack.c.h.b16 %v304
    %v377 = vunpack.c.l.b16 %v305
    %v378 = vunpack.c.l.b16 %v306
    %v379 = vunpack.c.h.b16 %v306
    %v380 = vunpack.c.l.b16 %v307
    %v381 = vunpack.c.l.b16 %v308
    %v382 = vunpack.c.h.b16 %v308
    %v383 = vunpack.c.l.b16 %v309
    %v384 = vunpack.c.l.b16 %v310
    %v385 = vunpack.c.h.b16 %v310
    %v386 = vunpack.c.l.b16 %v311
    %v387 = vunpack.c.l.b16 %v312
    %v388 = vunpack.c.h.b16 %v312
    %v389 = vunpack.c.l.b16 %v313
    %v390 = vunpack.c.l.b16 %v314
    %v391 = vunpack.c.h.b16 %v314
    %v392 = vunpack.c.l.b16 %v315
    %v393 = vunpack.c.l.b16 %v316
    %v394 = vunpack.c.h.b16 %v316
    %v395 = vunpack.c.l.b16 %v317
    %v396 = vunpack.c.l.b16 %v318
    %v397 = vunpack.c.h.b16 %v318
    %v398 = vunpack.c.l.b16 %v319
    %v399 = vunpack.c.l.b16 %v320
    %v400 = vunpack.c.h.b16 %v320
    %v401 = vunpack.c.l.b16 %v321
    %v402 = vunpack.c.l.b16 %v322
    %v403 = vunpack.c.h.b16 %v322
    %v404 = vunpack.c.l.b16 %v323
    %v405 = vunpack.c.l.b16 %v324
    %v406 = vunpack.c.h.b16 %v324
    %v407 = vunpack.c.l.b16 %v325
    %v408 = vunpack.c.l.b16 %v326
    %v409 = vunpack.c.h.b16 %v326
    %v410 = vunpack.c.l.b16 %v327
    %v411 = vunpack.c.l.b16 %v328
    %v412 = vunpack.c.h.b16 %v328
    %v413 = vunpack.c.l.b16 %v329
    %v414 = vunpack.c.l.b16 %v330
    %v415 = vunpack.c.h.b16 %v330
    %v416 = vunpack.c.l.b16 %v331
    %v417 = vunpack.c.l.b16 %v332
    %v418 = vunpack.c.h.b16 %v332
    %v419 = vunpack.c.l.b16 %v333
    %v420 = vpack.c.b16 %v375, %v372
    %v421 = vpack.c.b16 %v376, %v373
    %v422 = vpack.c.b16 %v377, %v374
    %v423 = vpack.c.b16 %v381, %v378
    %v424 = vpack.c.b16 %v382, %v379
    %v425 = vpack.c.b16 %v383, %v380
    %v426 = vpack.c.b16 %v387, %v384
    %v427 = vpack.c.b16 %v388, %v385
    %v428 = vpack.c.b16 %v389, %v386
    %v429 = vpack.c.b16 %v393, %v390
    %v430 = vpack.c.b16 %v394, %v391
    %v431 = vpack.c.b16 %v395, %v392
    %v432 = vpack.c.b16 %v399, %v396
    %v433 = vpack.c.b16 %v400, %v397
    %v434 = vpack.c.b16 %v401, %v398
    %v435 = vpack.c.b16 %v405, %v402
    %v436 = vpack.c.b16 %v406, %v403
    %v437 = vpack.c.b16 %v407, %v404
    %v438 = vpack.c.b16 %v411, %v408
    %v439 = vpack.c.b16 %v412, %v409
    %v440 = vpack.c.b16 %v413, %v410
    %v441 = vpack.c.b16 %v417, %v414
    %v442 = vpack.c.b16 %v418, %v415
    %v443 = vpack.c.b16 %v419, %v416
    %468 = vmatprep.subr.bf16.mxu0 %v442
    %469 = vmatpush1.bf16.msra.mxu0 %v441
    %470 = vmatprep.subr.bf16.mxu0 %v439
    %471 = vmatpush1.bf16.msra.mxu0 %v438
    %472 = vmatprep.subr.bf16.mxu0 %v436
    %473 = vmatpush1.bf16.msra.mxu0 %v435
    %474 = vmatprep.subr.bf16.mxu0 %v433
    %475 = vmatpush1.bf16.msra.mxu0 %v432
    %476 = vmatprep.subr.bf16.mxu0 %v430
    %477 = vmatpush1.bf16.msra.mxu0 %v429
    %478 = vmatprep.subr.bf16.mxu0 %v427
    %479 = vmatpush1.bf16.msra.mxu0 %v426
    %480 = vmatprep.subr.bf16.mxu0 %v424
    %481 = vmatpush1.bf16.msra.mxu0 %v423
    %482 = vmatprep.subr.bf16.mxu0 %v421
    %483 = vmatpush1.bf16.msra.mxu0 %v420
    %484 = vmatprep.subr.bf16.mxu0 0
    %485 = vmatpush2.bf16.msra.mxu0 0
    %486 = vmatprep.subr.bf16.mxu0 0
    %487 = vmatpush2.bf16.msra.mxu0 0
    %488 = vmatprep.subr.bf16.mxu0 0
    %489 = vmatpush2.bf16.msra.mxu0 0
    %490 = vmatprep.subr.bf16.mxu0 0
    %491 = vmatpush2.bf16.msra.mxu0 0
    %492 = vmatprep.subr.bf16.mxu0 0
    %493 = vmatpush2.bf16.msra.mxu0 0
    %494 = vmatprep.subr.bf16.mxu0 0
    %495 = vmatpush2.bf16.msra.mxu0 0
    %496 = vmatprep.subr.bf16.mxu0 0
    %497 = vmatpush2.bf16.msra.mxu0 0
    %498 = vmatprep.subr.bf16.mxu0 0
    %499 = vmatpush2.bf16.msra.mxu0 0
    %500 = vmatprep.mubr.bf16.mxu0 0
    %501 = vmatmul.mubr.bf16.gmra.mxu0 %v338
    %v502 = vpop.f32.mrf.mxu0
    %v503 = vadd.f32 0.0, %v502
    %v504 = vpop.f32.mrf.mxu0
    %v505 = vadd.f32 0.0, %v504
    %v506 = vpop.f32.mrf.mxu0
    %v507 = vadd.f32 0.0, %v506
    %v508 = vpop.f32.mrf.mxu0
    %v509 = vadd.f32 0.0, %v508
    %510 = vdwg.mxu0
    %511 = vmatprep.subr.bf16.mxu0 0
    %512 = vmatpush1.bf16.msra.mxu0 %v443
    %513 = vmatprep.subr.bf16.mxu0 0
    %514 = vmatpush1.bf16.msra.mxu0 %v440
    %515 = vmatprep.subr.bf16.mxu0 0
    %516 = vmatpush1.bf16.msra.mxu0 %v437
    %517 = vmatprep.subr.bf16.mxu0 0
    %518 = vmatpush1.bf16.msra.mxu0 %v434
    %519 = vmatprep.subr.bf16.mxu0 0
    %520 = vmatpush1.bf16.msra.mxu0 %v431
    %521 = vmatprep.subr.bf16.mxu0 0
    %522 = vmatpush1.bf16.msra.mxu0 %v428
    %523 = vmatprep.subr.bf16.mxu0 0
    %524 = vmatpush1.bf16.msra.mxu0 %v425
    %525 = vmatprep.subr.bf16.mxu0 0
    %526 = vmatpush1.bf16.msra.mxu0 %v422
    %527 = vmatprep.subr.bf16.mxu0 0
    %528 = vmatpush2.bf16.msra.mxu0 0
    %529 = vmatprep.subr.bf16.mxu0 0
    %530 = vmatpush2.bf16.msra.mxu0 0
    %531 = vmatprep.subr.bf16.mxu0 0
    %532 = vmatpush2.bf16.msra.mxu0 0
    %533 = vmatprep.subr.bf16.mxu0 0
    %534 = vmatpush2.bf16.msra.mxu0 0
    %535 = vmatprep.subr.bf16.mxu0 0
    %536 = vmatpush2.bf16.msra.mxu0 0
    %537 = vmatprep.subr.bf16.mxu0 0
    %538 = vmatpush2.bf16.msra.mxu0 0
    %539 = vmatprep.subr.bf16.mxu0 0
    %540 = vmatpush2.bf16.msra.mxu0 0
    %541 = vmatprep.subr.bf16.mxu0 0
    %542 = vmatpush2.bf16.msra.mxu0 0
    %543 = vmatprep.mubr.bf16.mxu0 0
    %544 = vmatmul.mubr.bf16.gmra.mxu0 %v338
    %v545 = vpop.f32.mrf.mxu0
    %v546 = vadd.f32 0.0, %v545
    %v547 = vpop.f32.mrf.mxu0
    %v548 = vpop.f32.mrf.mxu0
    %v549 = vadd.f32 0.0, %v548
    %v550 = vpop.f32.mrf.mxu0
    %551 = vdwg.mxu0
    %v552 = vld [vmem:[#allocation11] sm:$0xff]
    %v553 = vld [vmem:[#allocation11 + $0x8] sm:$0xff]
    %v554 = vld [vmem:[#allocation11 + $0x10] sm:$0xff]
    %v555 = vld [vmem:[#allocation11 + $0x18] sm:$0xff]
    %v556 = vld [vmem:[#allocation11 + $0x20] sm:$0xff]
    %v557 = vld [vmem:[#allocation11 + $0x28] sm:$0xff]
    %v558 = vld [vmem:[#allocation11 + $0x30] sm:$0xff]
    %v559 = vld [vmem:[#allocation11 + $0x38] sm:$0xff]
    %v560 = vld [vmem:[#allocation11 + $0x40] sm:$0xff]
    %v561 = vld [vmem:[#allocation11 + $0x48] sm:$0xff]
    %v562 = vld [vmem:[#allocation11 + $0x50] sm:$0xff]
    %v563 = vld [vmem:[#allocation11 + $0x58] sm:$0xff]
    %v564 = vld [vmem:[#allocation11 + $0x60] sm:$0xff]
    %v565 = vld [vmem:[#allocation11 + $0x68] sm:$0xff]
    %v566 = vld [vmem:[#allocation11 + $0x70] sm:$0xff]
    %v567 = vld [vmem:[#allocation11 + $0x78] sm:$0xff]
    %v570 = vunpack.c.l.b16 %v151
    %v571 = vunpack.c.l.b16 %v152
    %v572 = vpack.c.b16 %v571, %v570
    %v590 = vunpack.c.l.b16 %v552
    %v591 = vunpack.c.h.b16 %v552
    %v592 = vunpack.c.l.b16 %v553
    %v593 = vunpack.c.h.b16 %v553
    %v594 = vunpack.c.l.b16 %v554
    %v595 = vunpack.c.h.b16 %v554
    %v596 = vunpack.c.l.b16 %v555
    %v597 = vunpack.c.h.b16 %v555
    %v598 = vunpack.c.l.b16 %v556
    %v599 = vunpack.c.h.b16 %v556
    %v600 = vunpack.c.l.b16 %v557
    %v601 = vunpack.c.h.b16 %v557
    %v602 = vunpack.c.l.b16 %v558
    %v603 = vunpack.c.h.b16 %v558
    %v604 = vunpack.c.l.b16 %v559
    %v605 = vunpack.c.h.b16 %v559
    %v606 = vunpack.c.l.b16 %v560
    %v607 = vunpack.c.h.b16 %v560
    %v608 = vunpack.c.l.b16 %v561
    %v609 = vunpack.c.h.b16 %v561
    %v610 = vunpack.c.l.b16 %v562
    %v611 = vunpack.c.h.b16 %v562
    %v612 = vunpack.c.l.b16 %v563
    %v613 = vunpack.c.h.b16 %v563
    %v614 = vunpack.c.l.b16 %v564
    %v615 = vunpack.c.h.b16 %v564
    %v616 = vunpack.c.l.b16 %v565
    %v617 = vunpack.c.h.b16 %v565
    %v618 = vunpack.c.l.b16 %v566
    %v619 = vunpack.c.h.b16 %v566
    %v620 = vunpack.c.l.b16 %v567
    %v621 = vunpack.c.h.b16 %v567
    %v622 = vpack.c.b16 %v592, %v590
    %v623 = vpack.c.b16 %v593, %v591
    %v624 = vpack.c.b16 %v596, %v594
    %v625 = vpack.c.b16 %v597, %v595
    %v626 = vpack.c.b16 %v600, %v598
    %v627 = vpack.c.b16 %v601, %v599
    %v628 = vpack.c.b16 %v604, %v602
    %v629 = vpack.c.b16 %v605, %v603
    %v630 = vpack.c.b16 %v608, %v606
    %v631 = vpack.c.b16 %v609, %v607
    %v632 = vpack.c.b16 %v612, %v610
    %v633 = vpack.c.b16 %v613, %v611
    %v634 = vpack.c.b16 %v616, %v614
    %v635 = vpack.c.b16 %v617, %v615
    %v636 = vpack.c.b16 %v620, %v618
    %v637 = vpack.c.b16 %v621, %v619
    %654 = vmatprep.subr.bf16.mxu0 %v637
    %655 = vmatpush1.bf16.msra.mxu0 %v636
    %656 = vmatprep.subr.bf16.mxu0 %v635
    %657 = vmatpush1.bf16.msra.mxu0 %v634
    %658 = vmatprep.subr.bf16.mxu0 %v633
    %659 = vmatpush1.bf16.msra.mxu0 %v632
    %660 = vmatprep.subr.bf16.mxu0 %v631
    %661 = vmatpush1.bf16.msra.mxu0 %v630
    %662 = vmatprep.subr.bf16.mxu0 %v629
    %663 = vmatpush1.bf16.msra.mxu0 %v628
    %664 = vmatprep.subr.bf16.mxu0 %v627
    %665 = vmatpush1.bf16.msra.mxu0 %v626
    %666 = vmatprep.subr.bf16.mxu0 %v625
    %667 = vmatpush1.bf16.msra.mxu0 %v624
    %668 = vmatprep.subr.bf16.mxu0 %v623
    %669 = vmatpush1.bf16.msra.mxu0 %v622
    %670 = vmatprep.subr.bf16.mxu0 0
    %671 = vmatpush2.bf16.msra.mxu0 0
    %672 = vmatprep.subr.bf16.mxu0 0
    %673 = vmatpush2.bf16.msra.mxu0 0
    %674 = vmatprep.subr.bf16.mxu0 0
    %675 = vmatpush2.bf16.msra.mxu0 0
    %676 = vmatprep.subr.bf16.mxu0 0
    %677 = vmatpush2.bf16.msra.mxu0 0
    %678 = vmatprep.subr.bf16.mxu0 0
    %679 = vmatpush2.bf16.msra.mxu0 0
    %680 = vmatprep.subr.bf16.mxu0 0
    %681 = vmatpush2.bf16.msra.mxu0 0
    %682 = vmatprep.subr.bf16.mxu0 0
    %683 = vmatpush2.bf16.msra.mxu0 0
    %684 = vmatprep.subr.bf16.mxu0 0
    %685 = vmatpush2.bf16.msra.mxu0 0
    %686 = vmatprep.mubr.bf16.mxu0 0
    %687 = vmatmul.mubr.bf16.gmra.mxu0 %v572
    %v688 = vpop.f32.mrf.mxu0
    %v689 = vadd.f32 0.0, %v688
    %v690 = vpop.f32.mrf.mxu0
    %v691 = vadd.f32 0.0, %v690
    %v692 = vpop.f32.mrf.mxu0
    %v693 = vadd.f32 0.0, %v692
    %v694 = vpop.f32.mrf.mxu0
    %v695 = vadd.f32 0.0, %v694
    %696 = vdwg.mxu0
    %v697 = vld [vmem:[#allocation13] sm:$0xf]
    %v698 = vld [vmem:[#allocation13 + $0x4] sm:$0xf]
    %v699 = vld [vmem:[#allocation13 + $0x8] sm:$0xf]
    %v700 = vld [vmem:[#allocation13 + $0xc] sm:$0xf]
    %v701 = vld [vmem:[#allocation13 + $0x10] sm:$0xf]
    %v702 = vld [vmem:[#allocation13 + $0x14] sm:$0xf]
    %v703 = vld [vmem:[#allocation13 + $0x18] sm:$0xf]
    %v704 = vld [vmem:[#allocation13 + $0x1c] sm:$0xf]
    %v705 = vld [vmem:[#allocation13 + $0x20] sm:$0xf]
    %v706 = vld [vmem:[#allocation13 + $0x24] sm:$0xf]
    %v707 = vld [vmem:[#allocation13 + $0x28] sm:$0xf]
    %v708 = vld [vmem:[#allocation13 + $0x2c] sm:$0xf]
    %v709 = vld [vmem:[#allocation13 + $0x30] sm:$0xf]
    %v710 = vld [vmem:[#allocation13 + $0x34] sm:$0xf]
    %v711 = vld [vmem:[#allocation13 + $0x38] sm:$0xf]
    %v712 = vld [vmem:[#allocation13 + $0x3c] sm:$0xf]
    %v713 = vadd.f32 %v294, %v505
    %v714 = vadd.f32 %v298, %v509
    %v716 = vlaneseq
    %v717 = vshrl.u32 %v716, 7
    %v718 = vsub.s32 0, %v717
    %v719 = vrot.slane %v155, %v718
    %v721 = vadd.f32 %v713, %v719
    %v722 = vadd.f32 %v714, %v719
    %v723 = vadd.f32 %v294, %v689
    %v724 = vadd.f32 %v298, %v693
    %v725 = vadd.f32 %v723, %v719
    %v726 = vadd.f32 %v724, %v719
    %v727 = vadd.f32 %v503, %v689
    %v728 = vadd.f32 %v507, %v693
    %v729 = vadd.f32 %v727, %v719
    %v730 = vadd.f32 %v728, %v719
    %v731 = vunpack.c.l.bf16 %v147
    %v732 = vunpack.c.l.bf16 %v148
    %v733 = vunpack.c.l.bf16 %v149
    %v734 = vunpack.c.l.bf16 %v150
    %v735 = vmul.f32 %v731, %v733
    %v736 = vmul.f32 %v732, %v734
    %737 = vadd.xlane.f32.xlu0 %v735
    %v738 = vpop.xlane.xlu0 %737
    %739 = vadd.xlane.f32.xlu0 %v736
    %v740 = vpop.xlane.xlu0 %739
    %v741 = vunpack.c.l.bf16 %v151
    %v742 = vunpack.c.l.bf16 %v152
    %v743 = vmul.f32 %v731, %v741
    %v744 = vmul.f32 %v732, %v742
    %745 = vadd.xlane.f32.xlu0 %v743
    %v746 = vpop.xlane.xlu0 %745
    %747 = vadd.xlane.f32.xlu0 %v744
    %v748 = vpop.xlane.xlu0 %747
    %v749 = vmul.f32 %v733, %v741
    %v750 = vmul.f32 %v734, %v742
    %751 = vadd.xlane.f32.xlu0 %v749
    %v752 = vpop.xlane.xlu0 %751
    %753 = vadd.xlane.f32.xlu0 %v750
    %v754 = vpop.xlane.xlu0 %753
    %757 = vrot.lane.b32.xlu0 %v153, 127
    %v758 = vpop.permute.xlu0 %757
    %759 = vrot.lane.b32.xlu0 %v154, 127
    %v760 = vpop.permute.xlu0 %759
    %v763 = vadd.f32 %v153, %v758
    %v764 = vadd.f32 %v154, %v760
    %v765 = vadd.f32 %v738, 0.5
    %v766 = vadd.f32 %v740, 0.5
    %v767 = vrcp.pop %v765
    %v768 = vmul.f32 %v763, %v767
    %v769 = vrcp.pop %v766
    %v770 = vmul.f32 %v764, %v769
    %771 = vrot.lane.b32.xlu0 %v153, 126
    %v772 = vpop.permute.xlu0 %771
    %773 = vrot.lane.b32.xlu0 %v154, 126
    %v774 = vpop.permute.xlu0 %773
    %v777 = vadd.f32 %v153, %v772
    %v778 = vadd.f32 %v154, %v774
    %v779 = vadd.f32 %v746, 0.5
    %v780 = vadd.f32 %v748, 0.5
    %v781 = vrcp.pop %v779
    %v782 = vmul.f32 %v777, %v781
    %v783 = vrcp.pop %v780
    %v784 = vmul.f32 %v778, %v783
    %v785 = vadd.f32 %v752, 0.5
    %v786 = vadd.f32 %v754, 0.5
    %v787 = vrcp.pop %v785
    %v788 = vmul.f32 %v763, %v787
    %v789 = vrcp.pop %v786
    %v790 = vmul.f32 %v764, %v789
    %793 = vrot.lane.b32.xlu0 %v788, 127
    %v794 = vpop.permute.xlu0 %793
    %795 = vrot.lane.b32.xlu0 %v790, 127
    %v796 = vpop.permute.xlu0 %795
    %v799 = vadd.f32 %v782, %v794
    %v800 = vadd.f32 %v784, %v796
    %v801 = vrcp.pop %v799
    %v802 = vmul.f32 %v768, %v801
    %v803 = vrcp.pop %v800
    %v804 = vmul.f32 %v770, %v803
    %v805 = vadd.f32 %v768, %v794
    %v806 = vadd.f32 %v770, %v796
    %v807 = vrcp.pop %v805
    %v808 = vmul.f32 %v782, %v807
    %v809 = vrcp.pop %v806
    %v810 = vmul.f32 %v784, %v809
    %v811 = vadd.f32 %v768, %v782
    %v812 = vadd.f32 %v770, %v784
    %815 = vrot.lane.b32.xlu0 %v811, 1
    %v816 = vpop.permute.xlu0 %815
    %817 = vrot.lane.b32.xlu0 %v812, 1
    %v818 = vpop.permute.xlu0 %817
    %v821 = vrcp.pop %v816
    %v822 = vmul.f32 %v788, %v821
    %v823 = vrcp.pop %v818
    %v824 = vmul.f32 %v790, %v823
    %v827 = vunpack.c.l.b16 %v141
    %v828 = vunpack.c.l.b16 %v142
    %v829 = vpack.c.b16 %v828, %v827
    %v847 = vunpack.c.l.b16 %v697
    %v848 = vunpack.c.l.b16 %v698
    %v849 = vunpack.c.l.b16 %v699
    %v850 = vunpack.c.l.b16 %v700
    %v851 = vunpack.c.l.b16 %v701
    %v852 = vunpack.c.l.b16 %v702
    %v853 = vunpack.c.l.b16 %v703
    %v854 = vunpack.c.l.b16 %v704
    %v855 = vunpack.c.l.b16 %v705
    %v856 = vunpack.c.l.b16 %v706
    %v857 = vunpack.c.l.b16 %v707
    %v858 = vunpack.c.l.b16 %v708
    %v859 = vunpack.c.l.b16 %v709
    %v860 = vunpack.c.l.b16 %v710
    %v861 = vunpack.c.l.b16 %v711
    %v862 = vunpack.c.l.b16 %v712
    %v863 = vpack.c.b16 %v848, %v847
    %v864 = vpack.c.b16 %v850, %v849
    %v865 = vpack.c.b16 %v852, %v851
    %v866 = vpack.c.b16 %v854, %v853
    %v867 = vpack.c.b16 %v856, %v855
    %v868 = vpack.c.b16 %v858, %v857
    %v869 = vpack.c.b16 %v860, %v859
    %v870 = vpack.c.b16 %v862, %v861
    %879 = vmatprep.subr.bf16.mxu0 0
    %880 = vmatpush1.bf16.msra.mxu0 %v870
    %881 = vmatprep.subr.bf16.mxu0 0
    %882 = vmatpush1.bf16.msra.mxu0 %v869
    %883 = vmatprep.subr.bf16.mxu0 0
    %884 = vmatpush1.bf16.msra.mxu0 %v868
    %885 = vmatprep.subr.bf16.mxu0 0
    %886 = vmatpush1.bf16.msra.mxu0 %v867
    %887 = vmatprep.subr.bf16.mxu0 0
    %888 = vmatpush1.bf16.msra.mxu0 %v866
    %889 = vmatprep.subr.bf16.mxu0 0
    %890 = vmatpush1.bf16.msra.mxu0 %v865
    %891 = vmatprep.subr.bf16.mxu0 0
    %892 = vmatpush1.bf16.msra.mxu0 %v864
    %893 = vmatprep.subr.bf16.mxu0 0
    %894 = vmatpush1.bf16.msra.mxu0 %v863
    %895 = vmatprep.subr.bf16.mxu0 0
    %896 = vmatpush2.bf16.msra.mxu0 0
    %897 = vmatprep.subr.bf16.mxu0 0
    %898 = vmatpush2.bf16.msra.mxu0 0
    %899 = vmatprep.subr.bf16.mxu0 0
    %900 = vmatpush2.bf16.msra.mxu0 0
    %901 = vmatprep.subr.bf16.mxu0 0
    %902 = vmatpush2.bf16.msra.mxu0 0
    %903 = vmatprep.subr.bf16.mxu0 0
    %904 = vmatpush2.bf16.msra.mxu0 0
    %905 = vmatprep.subr.bf16.mxu0 0
    %906 = vmatpush2.bf16.msra.mxu0 0
    %907 = vmatprep.subr.bf16.mxu0 0
    %908 = vmatpush2.bf16.msra.mxu0 0
    %909 = vmatprep.subr.bf16.mxu0 0
    %910 = vmatpush2.bf16.msra.mxu0 0
    %911 = vmatprep.mubr.bf16.mxu0 0
    %912 = vmatmul.mubr.bf16.gmra.mxu0 %v829
    %v913 = vpop.f32.mrf.mxu0
    %v914 = vadd.f32 %v691, %v913
    %v915 = vpop.f32.mrf.mxu0
    %v916 = vpop.f32.mrf.mxu0
    %v917 = vadd.f32 %v695, %v916
    %v918 = vpop.f32.mrf.mxu0
    %919 = vdwg.mxu0
    %v921 = vlaneseq
    %v922 = vshrl.u32 %v921, 7
    %v923 = vsub.s32 0, %v922
    %v924 = vrot.slane %v156, %v923
    %v926 = vadd.f32 %v914, %v924
    %v927 = vadd.f32 %v917, %v924
    %v930 = vunpack.c.l.b16 %v143
    %v931 = vunpack.c.l.b16 %v144
    %v932 = vpack.c.b16 %v931, %v930
    %934 = vmatprep.subr.bf16.mxu0 0
    %935 = vmatpush1.bf16.msra.mxu0 %v870
    %936 = vmatprep.subr.bf16.mxu0 0
    %937 = vmatpush1.bf16.msra.mxu0 %v869
    %938 = vmatprep.subr.bf16.mxu0 0
    %939 = vmatpush1.bf16.msra.mxu0 %v868
    %940 = vmatprep.subr.bf16.mxu0 0
    %941 = vmatpush1.bf16.msra.mxu0 %v867
    %942 = vmatprep.subr.bf16.mxu0 0
    %943 = vmatpush1.bf16.msra.mxu0 %v866
    %944 = vmatprep.subr.bf16.mxu0 0
    %945 = vmatpush1.bf16.msra.mxu0 %v865
    %946 = vmatprep.subr.bf16.mxu0 0
    %947 = vmatpush1.bf16.msra.mxu0 %v864
    %948 = vmatprep.subr.bf16.mxu0 0
    %949 = vmatpush1.bf16.msra.mxu0 %v863
    %950 = vmatprep.subr.bf16.mxu0 0
    %951 = vmatpush2.bf16.msra.mxu0 0
    %952 = vmatprep.subr.bf16.mxu0 0
    %953 = vmatpush2.bf16.msra.mxu0 0
    %954 = vmatprep.subr.bf16.mxu0 0
    %955 = vmatpush2.bf16.msra.mxu0 0
    %956 = vmatprep.subr.bf16.mxu0 0
    %957 = vmatpush2.bf16.msra.mxu0 0
    %958 = vmatprep.subr.bf16.mxu0 0
    %959 = vmatpush2.bf16.msra.mxu0 0
    %960 = vmatprep.subr.bf16.mxu0 0
    %961 = vmatpush2.bf16.msra.mxu0 0
    %962 = vmatprep.subr.bf16.mxu0 0
    %963 = vmatpush2.bf16.msra.mxu0 0
    %964 = vmatprep.subr.bf16.mxu0 0
    %965 = vmatpush2.bf16.msra.mxu0 0
    %966 = vmatprep.mubr.bf16.mxu0 0
    %967 = vmatmul.mubr.bf16.gmra.mxu0 %v932
    %v968 = vpop.f32.mrf.mxu0
    %v969 = vadd.f32 %v546, %v968
    %v970 = vpop.f32.mrf.mxu0
    %v971 = vpop.f32.mrf.mxu0
    %v972 = vadd.f32 %v549, %v971
    %v973 = vpop.f32.mrf.mxu0
    %974 = vdwg.mxu0
    %v975 = vadd.f32 %v969, %v924
    %v976 = vadd.f32 %v972, %v924
    %v979 = vunpack.c.l.b16 %v145
    %v980 = vunpack.c.l.b16 %v146
    %v981 = vpack.c.b16 %v980, %v979
    %983 = vmatprep.subr.bf16.mxu0 0
    %984 = vmatpush1.bf16.msra.mxu0 %v870
    %985 = vmatprep.subr.bf16.mxu0 0
    %986 = vmatpush1.bf16.msra.mxu0 %v869
    %987 = vmatprep.subr.bf16.mxu0 0
    %988 = vmatpush1.bf16.msra.mxu0 %v868
    %989 = vmatprep.subr.bf16.mxu0 0
    %990 = vmatpush1.bf16.msra.mxu0 %v867
    %991 = vmatprep.subr.bf16.mxu0 0
    %992 = vmatpush1.bf16.msra.mxu0 %v866
    %993 = vmatprep.subr.bf16.mxu0 0
    %994 = vmatpush1.bf16.msra.mxu0 %v865
    %995 = vmatprep.subr.bf16.mxu0 0
    %996 = vmatpush1.bf16.msra.mxu0 %v864
    %997 = vmatprep.subr.bf16.mxu0 0
    %998 = vmatpush1.bf16.msra.mxu0 %v863
    %999 = vmatprep.subr.bf16.mxu0 0
    %1000 = vmatpush2.bf16.msra.mxu0 0
    %1001 = vmatprep.subr.bf16.mxu0 0
    %1002 = vmatpush2.bf16.msra.mxu0 0
    %1003 = vmatprep.subr.bf16.mxu0 0
    %1004 = vmatpush2.bf16.msra.mxu0 0
    %1005 = vmatprep.subr.bf16.mxu0 0
    %1006 = vmatpush2.bf16.msra.mxu0 0
    %1007 = vmatprep.subr.bf16.mxu0 0
    %1008 = vmatpush2.bf16.msra.mxu0 0
    %1009 = vmatprep.subr.bf16.mxu0 0
    %1010 = vmatpush2.bf16.msra.mxu0 0
    %1011 = vmatprep.subr.bf16.mxu0 0
    %1012 = vmatpush2.bf16.msra.mxu0 0
    %1013 = vmatprep.subr.bf16.mxu0 0
    %1014 = vmatpush2.bf16.msra.mxu0 0
    %1015 = vmatprep.mubr.bf16.mxu0 0
    %1016 = vmatmul.mubr.bf16.gmra.mxu0 %v981
    %v1017 = vpop.f32.mrf.mxu0
    %v1018 = vadd.f32 %v296, %v1017
    %v1019 = vpop.f32.mrf.mxu0
    %v1020 = vpop.f32.mrf.mxu0
    %v1021 = vadd.f32 %v300, %v1020
    %v1022 = vpop.f32.mrf.mxu0
    %1023 = vdwg.mxu0
    %v1024 = vadd.f32 %v1018, %v924
    %v1025 = vadd.f32 %v1021, %v924
    %v1026 = vunpack.c.l.bf16 %v141
    %v1027 = vunpack.c.l.bf16 %v142
    %v1028 = vmul.f32 %v1026, %v741
    %v1029 = vmul.f32 %v1027, %v742
    %1030 = vadd.xlane.f32.xlu0 %v1028
    %v1031 = vpop.xlane.xlu0 %1030
    %1032 = vadd.xlane.f32.xlu0 %v1029
    %v1033 = vpop.xlane.xlu0 %1032
    %v1034 = vunpack.c.l.bf16 %v143
    %v1035 = vunpack.c.l.bf16 %v144
    %v1036 = vmul.f32 %v1034, %v733
    %v1037 = vmul.f32 %v1035, %v734
    %1038 = vadd.xlane.f32.xlu0 %v1036
    %v1039 = vpop.xlane.xlu0 %1038
    %1040 = vadd.xlane.f32.xlu0 %v1037
    %v1041 = vpop.xlane.xlu0 %1040
    %v1042 = vunpack.c.l.bf16 %v145
    %v1043 = vunpack.c.l.bf16 %v146
    %v1044 = vmul.f32 %v1042, %v731
    %v1045 = vmul.f32 %v1043, %v732
    %1046 = vadd.xlane.f32.xlu0 %v1044
    %v1047 = vpop.xlane.xlu0 %1046
    %1048 = vadd.xlane.f32.xlu0 %v1045
    %v1049 = vpop.xlane.xlu0 %1048
    %1050 = vrot.lane.b32.xlu0 %v153, 123
    %v1051 = vpop.permute.xlu0 %1050
    %1052 = vrot.lane.b32.xlu0 %v154, 123
    %v1053 = vpop.permute.xlu0 %1052
    %v1056 = vadd.f32 %v153, %v1051
    %v1057 = vadd.f32 %v154, %v1053
    %v1058 = vadd.f32 %v1031, 0.5
    %v1059 = vadd.f32 %v1033, 0.5
    %v1060 = vrcp.pop %v1058
    %v1061 = vmul.f32 %v1056, %v1060
    %v1062 = vrcp.pop %v1059
    %v1063 = vmul.f32 %v1057, %v1062
    %1064 = vrot.lane.b32.xlu0 %v153, 125
    %v1065 = vpop.permute.xlu0 %1064
    %1066 = vrot.lane.b32.xlu0 %v154, 125
    %v1067 = vpop.permute.xlu0 %1066
    %v1070 = vadd.f32 %v153, %v1065
    %v1071 = vadd.f32 %v154, %v1067
    %v1072 = vadd.f32 %v1039, 0.5
    %v1073 = vadd.f32 %v1041, 0.5
    %v1074 = vrcp.pop %v1072
    %v1075 = vmul.f32 %v1070, %v1074
    %v1076 = vrcp.pop %v1073
    %v1077 = vmul.f32 %v1071, %v1076
    %v1078 = vadd.f32 %v1047, 0.5
    %v1079 = vadd.f32 %v1049, 0.5
    %v1080 = vrcp.pop %v1078
    %v1081 = vmul.f32 %v763, %v1080
    %v1082 = vrcp.pop %v1079
    %v1083 = vmul.f32 %v764, %v1082
    %1086 = vrot.lane.b32.xlu0 %v1081, 127
    %v1087 = vpop.permute.xlu0 %1086
    %1088 = vrot.lane.b32.xlu0 %v1083, 127
    %v1089 = vpop.permute.xlu0 %1088
    %v1092 = vadd.f32 %v1075, %v1087
    %v1093 = vadd.f32 %v1077, %v1089
    %1096 = vrot.lane.b32.xlu0 %v1092, 127
    %v1097 = vpop.permute.xlu0 %1096
    %1098 = vrot.lane.b32.xlu0 %v1093, 127
    %v1099 = vpop.permute.xlu0 %1098
    %v1102 = vrcp.pop %v1097
    %v1103 = vmul.f32 %v1061, %v1102
    %v1104 = vrcp.pop %v1099
    %v1105 = vmul.f32 %v1063, %v1104
    %1106 = vrot.lane.b32.xlu0 %v1081, 126
    %v1107 = vpop.permute.xlu0 %1106
    %1108 = vrot.lane.b32.xlu0 %v1083, 126
    %v1109 = vpop.permute.xlu0 %1108
    %v1112 = vadd.f32 %v1061, %v1107
    %v1113 = vadd.f32 %v1063, %v1109
    %1116 = vrot.lane.b32.xlu0 %v1112, 1
    %v1117 = vpop.permute.xlu0 %1116
    %1118 = vrot.lane.b32.xlu0 %v1113, 1
    %v1119 = vpop.permute.xlu0 %1118
    %v1122 = vrcp.pop %v1117
    %v1123 = vmul.f32 %v1075, %v1122
    %v1124 = vrcp.pop %v1119
    %v1125 = vmul.f32 %v1077, %v1124
    %1128 = vrot.lane.b32.xlu0 %v1075, 127
    %v1129 = vpop.permute.xlu0 %1128
    %1130 = vrot.lane.b32.xlu0 %v1077, 127
    %v1131 = vpop.permute.xlu0 %1130
    %v1134 = vadd.f32 %v1061, %v1129
    %v1135 = vadd.f32 %v1063, %v1131
    %1138 = vrot.lane.b32.xlu0 %v1134, 2
    %v1139 = vpop.permute.xlu0 %1138
    %1140 = vrot.lane.b32.xlu0 %v1135, 2
    %v1141 = vpop.permute.xlu0 %1140
    %v1144 = vrcp.pop %v1139
    %v1145 = vmul.f32 %v1081, %v1144
    %v1146 = vrcp.pop %v1141
    %v1147 = vmul.f32 %v1083, %v1146
    %1149 = vset.pattern.permute.xlu0 0
    %1150 = vperm.xlu0 %1149, %v1103
    %v1151 = vpop.permute.xlu0 %1150
    %1154 = vset.pattern.permute.xlu0 0
    %1155 = vperm.xlu0 %1154, %v1105
    %v1156 = vpop.permute.xlu0 %1155
    %v1158 = vmul.f32 %v1151, %v926
    %v1159 = vmul.f32 %v1156, %v927
    %1161 = vset.pattern.permute.xlu0 1
    %1162 = vperm.xlu0 %1161, %v1123
    %v1163 = vpop.permute.xlu0 %1162
    %1166 = vset.pattern.permute.xlu0 1
    %1167 = vperm.xlu0 %1166, %v1125
    %v1168 = vpop.permute.xlu0 %1167
    %v1170 = vmul.f32 %v1163, %v975
    %v1171 = vmul.f32 %v1168, %v976
    %v1172 = vadd.f32 %v1158, %v1170
    %v1173 = vadd.f32 %v1159, %v1171
    %1175 = vset.pattern.permute.xlu0 2
    %1176 = vperm.xlu0 %1175, %v1145
    %v1177 = vpop.permute.xlu0 %1176
    %1180 = vset.pattern.permute.xlu0 2
    %1181 = vperm.xlu0 %1180, %v1147
    %v1182 = vpop.permute.xlu0 %1181
    %v1184 = vmul.f32 %v1177, %v1024
    %v1185 = vmul.f32 %v1182, %v1025
    %v1186 = vadd.f32 %v1172, %v1184
    %v1187 = vadd.f32 %v1173, %v1185
    %1189 = vset.pattern.permute.xlu0 3
    %1190 = vperm.xlu0 %1189, %v802
    %v1191 = vpop.permute.xlu0 %1190
    %1194 = vset.pattern.permute.xlu0 3
    %1195 = vperm.xlu0 %1194, %v804
    %v1196 = vpop.permute.xlu0 %1195
    %v1198 = vmul.f32 %v1191, %v721
    %v1199 = vmul.f32 %v1196, %v722
    %v1200 = vadd.f32 %v1186, %v1198
    %v1201 = vadd.f32 %v1187, %v1199
    %1203 = vset.pattern.permute.xlu0 3
    %1204 = vperm.xlu0 %1203, %v808
    %v1205 = vpop.permute.xlu0 %1204
    %1208 = vset.pattern.permute.xlu0 3
    %1209 = vperm.xlu0 %1208, %v810
    %v1210 = vpop.permute.xlu0 %1209
    %v1212 = vmul.f32 %v1205, %v725
    %v1213 = vmul.f32 %v1210, %v726
    %v1214 = vadd.f32 %v1200, %v1212
    %v1215 = vadd.f32 %v1201, %v1213
    %1217 = vset.pattern.permute.xlu0 4
    %1218 = vperm.xlu0 %1217, %v822
    %v1219 = vpop.permute.xlu0 %1218
    %1222 = vset.pattern.permute.xlu0 4
    %1223 = vperm.xlu0 %1222, %v824
    %v1224 = vpop.permute.xlu0 %1223
    %v1226 = vmul.f32 %v1219, %v729
    %v1227 = vmul.f32 %v1224, %v730
    %v1228 = vadd.f32 %v1214, %v1226
    %v1229 = vadd.f32 %v1215, %v1227
    %1230 = vst [vmem:[#allocation14] sm:$0xff] %v1228
    %1231 = vst [vmem:[#allocation14 + $0x8] sm:$0xff] %v1229
    // Predicated region
    $region82: #{tpu_custom_call.1} parent=1 // pred_check
      _
    $region83: #{tpu_custom_call.1} parent=1 // pred_check_branch
      %1233 = sbr.rel (0) target = $region85
    $region84: #{tpu_custom_call.1} parent=1 // pred_region
      %s1235 = ssub.s32 256, 256
      %1236 = vsyncadd [#allocation4], %s1235
      %s1237 = sshll.u32 [#allocation14], 4
      %s1238 = int_to_ptr.vmem [resolvable:$true] %s1237
      %1243 = dma.vmem_to_hbm [thread:$0]  %s1238, 256, %s13, [#allocation4], 128, 128, 8
    $region85: #{tpu_custom_call.1} parent=1 // pred_fallthru
      _
    // Predicated region
    $region86: #{tpu_custom_call.1} parent=1 // pred_check
      _
    $region87: #{tpu_custom_call.1} parent=1 // pred_check_branch
      %1245 = sbr.rel (0) target = $region89
    $region88: #{tpu_custom_call.1} parent=1 // pred_region
      %1246 = dma.done [#allocation4], 256
    $region89: #{tpu_custom_call.1} parent=1 // pred_fallthru
      _
    %1247 = vsyncpa [#allocation3], 1
    %1248 = vsyncpa [#allocation6], 1
    %1249 = vsyncpa [#allocation9], 1
    %1250 = vsyncpa [#allocation12], 1
    %1251 = vsyncpa [#allocation4], 1

// kernel: tpu_custom_call.1
$region0: #{tpu_custom_call.1}
  #allocation0 [shape = 'u32[]', space=smem, size = 0x4, offset = 0x4, fixed_abs, tag = 'smem constant byte address 0x4 - core index']
  #allocation1 [shape = 'u32[144,128]{1,0:T(1,128)}', space=vmem, size = 0x12000, scoped, tag = 'internal scratch']
  %s0 = inlined_call_operand.vmem [shape: bf16[16,128], index: 0, kind: input, shape index: {}]
  %s1 = inlined_call_operand.vmem [shape: bf16[16,128], index: 1, kind: input, shape index: {}]
  %s2 = inlined_call_operand.vmem [shape: bf16[16,128], index: 2, kind: input, shape index: {}]
  %s3 = inlined_call_operand.hbm [shape: bf16[16,128], index: 3, kind: input, shape index: {}]
  %s4 = inlined_call_operand.hbm [shape: bf16[16,128], index: 4, kind: input, shape index: {}]
  %s5 = inlined_call_operand.hbm [shape: bf16[16,128], index: 5, kind: input, shape index: {}]
  %s6 = inlined_call_operand.vmem [shape: f32[16,8], index: 6, kind: input, shape index: {}]
  %s7 = inlined_call_operand.hbm [shape: bf16[128,256], index: 7, kind: input, shape index: {}]
  %s8 = inlined_call_operand.hbm [shape: bf16[128,384], index: 8, kind: input, shape index: {}]
  %s9 = inlined_call_operand.hbm [shape: bf16[128,256], index: 9, kind: input, shape index: {}]
  %s10 = inlined_call_operand.hbm [shape: bf16[128,128], index: 10, kind: input, shape index: {}]
  %s11 = inlined_call_operand.vmem [shape: f32[1,128], index: 11, kind: input, shape index: {}]
  %s12 = inlined_call_operand.vmem [shape: f32[1,128], index: 12, kind: input, shape index: {}]
  %s13 = inlined_call_operand.hbm [shape: f32[16,128], index: 13, kind: output, shape index: {}]
  %s14 = sld [smem:[#allocation0]]
  $region90: #{tpu_custom_call.1} parent=0
    _
  %s16 = ssub.s32 1, %s14
  %s17 = scalar_select 0, %s16, %s14
  $region1: #{tpu_custom_call.1} parent=0
    #allocation2 [shape = 'u8[4096]{0}', space=vmem, size = 0x1000, scoped, tag = 'input window, operand 3, single buffered']
    #allocation3 [shape = 's32[1]{0}', space=sflag, size = 0x4, scoped, tag = 'scoped memory for tpu_custom_call.1']
    #allocation4 [shape = 's32[1]{0}', space=sflag, size = 0x4, scoped, tag = 'scoped memory for tpu_custom_call.1']
    #allocation5 [shape = 'u8[4096]{0}', space=vmem, size = 0x1000, scoped, tag = 'input window, operand 4, single buffered']
    #allocation6 [shape = 's32[1]{0}', space=sflag, size = 0x4, scoped, tag = 'scoped memory for tpu_custom_call.1']
    #allocation7 [shape = 'u8[4096]{0}', space=vmem, size = 0x1000, scoped, tag = 'input window, operand 5, single buffered']
    #allocation8 [shape = 'u8[65536]{0}', space=vmem, size = 0x10000, scoped, tag = 'input window, operand 7, single buffered']
    #allocation9 [shape = 's32[1]{0}', space=sflag, size = 0x4, scoped, tag = 'scoped memory for tpu_custom_call.1']
    #allocation10 [shape = 'u8[98304]{0}', space=vmem, size = 0x18000, scoped, tag = 'input window, operand 8, single buffered']
    #allocation11 [shape = 'u8[65536]{0}', space=vmem, size = 0x10000, scoped, tag = 'input window, operand 9, single buffered']
    #allocation12 [shape = 's32[1]{0}', space=sflag, size = 0x4, scoped, tag = 'scoped memory for tpu_custom_call.1']
    #allocation13 [shape = 'u8[32768]{0}', space=vmem, size = 0x8000, scoped, tag = 'input window, operand 10, single buffered']
    #allocation14 [shape = 'u8[8192]{0}', space=vmem, size = 0x2000, scoped, tag = 'output window, operand 0, single buffered']
    %18 = vsyncpa [#allocation3], 0
    %19 = vsyncpa [#allocation6], 0
    %20 = vsyncpa [#allocation9], 0
    %21 = vsyncpa [#allocation12], 0
    %22 = vsyncpa [#allocation4], 0
    // Predicated region
    $region2: #{tpu_custom_call.1} parent=1 // pred_check
      _
    $region3: #{tpu_custom_call.1} parent=1 // pred_check_branch
      %24 = sbr.rel (0) target = $region5
    $region4: #{tpu_custom_call.1} parent=1 // pred_region
      _
    $region5: #{tpu_custom_call.1} parent=1 // pred_fallthru
      _
    // Predicated region
    $region6: #{tpu_custom_call.1} parent=1 // pred_check
      _
    $region7: #{tpu_custom_call.1} parent=1 // pred_check_branch
      %26 = sbr.rel (0) target = $region9
    $region8: #{tpu_custom_call.1} parent=1 // pred_region
      _
    $region9: #{tpu_custom_call.1} parent=1 // pred_fallthru
      _
    // Predicated region
    $region10: #{tpu_custom_call.1} parent=1 // pred_check
      _
    $region11: #{tpu_custom_call.1} parent=1 // pred_check_branch
      %28 = sbr.rel (0) target = $region13
    $region12: #{tpu_custom_call.1} parent=1 // pred_region
      _
    $region13: #{tpu_custom_call.1} parent=1 // pred_fallthru
      _
    // Predicated region
    $region14: #{tpu_custom_call.1} parent=1 // pred_check
      _
    $region15: #{tpu_custom_call.1} parent=1 // pred_check_branch
      %30 = sbr.rel (0) target = $region17
    $region16: #{tpu_custom_call.1} parent=1 // pred_region
      %s32 = ssub.s32 128, 128
      %33 = vsyncadd [#allocation3], %s32
      %s34 = sshll.u32 [#allocation2], 4
      %s35 = int_to_ptr.vmem [resolvable:$true] %s34
      %40 = dma.hbm_to_vmem [thread:$0]  %s3, 128, %s35, [#allocation3], 64, 64, 4
    $region17: #{tpu_custom_call.1} parent=1 // pred_fallthru
      _
    // Predicated region
    $region18: #{tpu_custom_call.1} parent=1 // pred_check
      _
    $region19: #{tpu_custom_call.1} parent=1 // pred_check_branch
      %42 = sbr.rel (0) target = $region21
    $region20: #{tpu_custom_call.1} parent=1 // pred_region
      %s44 = ssub.s32 128, 128
      %45 = vsyncadd [#allocation6], %s44
      %s46 = sshll.u32 [#allocation5], 4
      %s47 = int_to_ptr.vmem [resolvable:$true] %s46
      %52 = dma.hbm_to_vmem [thread:$0]  %s4, 128, %s47, [#allocation6], 64, 64, 4
    $region21: #{tpu_custom_call.1} parent=1 // pred_fallthru
      _
    // Predicated region
    $region22: #{tpu_custom_call.1} parent=1 // pred_check
      _
    $region23: #{tpu_custom_call.1} parent=1 // pred_check_branch
      %54 = sbr.rel (0) target = $region25
    $region24: #{tpu_custom_call.1} parent=1 // pred_region
      %s56 = ssub.s32 128, 128
      %57 = vsyncadd [#allocation6], %s56
      %s58 = sshll.u32 [#allocation7], 4
      %s59 = int_to_ptr.vmem [resolvable:$true] %s58
      %64 = dma.hbm_to_vmem [thread:$0]  %s5, 128, %s59, [#allocation6], 64, 64, 4
    $region25: #{tpu_custom_call.1} parent=1 // pred_fallthru
      _
    // Predicated region
    $region26: #{tpu_custom_call.1} parent=1 // pred_check
      _
    $region27: #{tpu_custom_call.1} parent=1 // pred_check_branch
      %66 = sbr.rel (0) target = $region29
    $region28: #{tpu_custom_call.1} parent=1 // pred_region
      _
    $region29: #{tpu_custom_call.1} parent=1 // pred_fallthru
      _
    // Predicated region
    $region30: #{tpu_custom_call.1} parent=1 // pred_check
      _
    $region31: #{tpu_custom_call.1} parent=1 // pred_check_branch
      %68 = sbr.rel (0) target = $region33
    $region32: #{tpu_custom_call.1} parent=1 // pred_region
      %s70 = ssub.s32 2048, 2048
      %71 = vsyncadd [#allocation9], %s70
      %s72 = sshll.u32 [#allocation8], 4
      %s73 = int_to_ptr.vmem [resolvable:$true] %s72
      %78 = dma.hbm_to_vmem [thread:$0]  %s7, 2048, %s73, [#allocation9], 128, 128, 8
    $region33: #{tpu_custom_call.1} parent=1 // pred_fallthru
      _
    // Predicated region
    $region34: #{tpu_custom_call.1} parent=1 // pred_check
      _
    $region35: #{tpu_custom_call.1} parent=1 // pred_check_branch
      %80 = sbr.rel (0) target = $region37
    $region36: #{tpu_custom_call.1} parent=1 // pred_region
      %s82 = ssub.s32 3072, 3072
      %83 = vsyncadd [#allocation9], %s82
      %s84 = sshll.u32 [#allocation10], 4
      %s85 = int_to_ptr.vmem [resolvable:$true] %s84
      %90 = dma.hbm_to_vmem [thread:$0]  %s8, 3072, %s85, [#allocation9], 192, 192, 12
    $region37: #{tpu_custom_call.1} parent=1 // pred_fallthru
      _
    // Predicated region
    $region38: #{tpu_custom_call.1} parent=1 // pred_check
      _
    $region39: #{tpu_custom_call.1} parent=1 // pred_check_branch
      %92 = sbr.rel (0) target = $region41
    $region40: #{tpu_custom_call.1} parent=1 // pred_region
      %s94 = ssub.s32 2048, 2048
      %95 = vsyncadd [#allocation12], %s94
      %s96 = sshll.u32 [#allocation11], 4
      %s97 = int_to_ptr.vmem [resolvable:$true] %s96
      %102 = dma.hbm_to_vmem [thread:$0]  %s9, 2048, %s97, [#allocation12], 128, 128, 8
    $region41: #{tpu_custom_call.1} parent=1 // pred_fallthru
      _
    // Predicated region
    $region42: #{tpu_custom_call.1} parent=1 // pred_check
      _
    $region43: #{tpu_custom_call.1} parent=1 // pred_check_branch
      %104 = sbr.rel (0) target = $region45
    $region44: #{tpu_custom_call.1} parent=1 // pred_region
      %s106 = ssub.s32 1024, 1024
      %107 = vsyncadd [#allocation12], %s106
      %s108 = sshll.u32 [#allocation13], 4
      %s109 = int_to_ptr.vmem [resolvable:$true] %s108
      %114 = dma.hbm_to_vmem [thread:$0]  %s10, 1024, %s109, [#allocation12], 64, 64, 4
    $region45: #{tpu_custom_call.1} parent=1 // pred_fallthru
      _
    // Predicated region
    $region46: #{tpu_custom_call.1} parent=1 // pred_check
      _
    $region47: #{tpu_custom_call.1} parent=1 // pred_check_branch
      %116 = sbr.rel (0) target = $region49
    $region48: #{tpu_custom_call.1} parent=1 // pred_region
      _
    $region49: #{tpu_custom_call.1} parent=1 // pred_fallthru
      _
    // Predicated region
    $region50: #{tpu_custom_call.1} parent=1 // pred_check
      _
    $region51: #{tpu_custom_call.1} parent=1 // pred_check_branch
      %118 = sbr.rel (0) target = $region53
    $region52: #{tpu_custom_call.1} parent=1 // pred_region
      _
    $region53: #{tpu_custom_call.1} parent=1 // pred_fallthru
      _
    // Predicated region
    $region54: #{tpu_custom_call.1} parent=1 // pred_check
      _
    $region55: #{tpu_custom_call.1} parent=1 // pred_check_branch
      %120 = sbr.rel (0) target = $region57
    $region56: #{tpu_custom_call.1} parent=1 // pred_region
      %121 = dma.done [#allocation3], 128
    $region57: #{tpu_custom_call.1} parent=1 // pred_fallthru
      _
    // Predicated region
    $region58: #{tpu_custom_call.1} parent=1 // pred_check
      _
    $region59: #{tpu_custom_call.1} parent=1 // pred_check_branch
      %123 = sbr.rel (0) target = $region61
    $region60: #{tpu_custom_call.1} parent=1 // pred_region
      %124 = dma.done [#allocation6], 128
    $region61: #{tpu_custom_call.1} parent=1 // pred_fallthru
      _
    // Predicated region
    $region62: #{tpu_custom_call.1} parent=1 // pred_check
      _
    $region63: #{tpu_custom_call.1} parent=1 // pred_check_branch
      %126 = sbr.rel (0) target = $region65
    $region64: #{tpu_custom_call.1} parent=1 // pred_region
      %127 = dma.done [#allocation6], 128
    $region65: #{tpu_custom_call.1} parent=1 // pred_fallthru
      _
    // Predicated region
    $region66: #{tpu_custom_call.1} parent=1 // pred_check
      _
    $region67: #{tpu_custom_call.1} parent=1 // pred_check_branch
      %129 = sbr.rel (0) target = $region69
    $region68: #{tpu_custom_call.1} parent=1 // pred_region
      %130 = dma.done [#allocation9], 2048
    $region69: #{tpu_custom_call.1} parent=1 // pred_fallthru
      _
    // Predicated region
    $region70: #{tpu_custom_call.1} parent=1 // pred_check
      _
    $region71: #{tpu_custom_call.1} parent=1 // pred_check_branch
      %132 = sbr.rel (0) target = $region73
    $region72: #{tpu_custom_call.1} parent=1 // pred_region
      %133 = dma.done [#allocation9], 3072
    $region73: #{tpu_custom_call.1} parent=1 // pred_fallthru
      _
    // Predicated region
    $region74: #{tpu_custom_call.1} parent=1 // pred_check
      _
    $region75: #{tpu_custom_call.1} parent=1 // pred_check_branch
      %135 = sbr.rel (0) target = $region77
    $region76: #{tpu_custom_call.1} parent=1 // pred_region
      %136 = dma.done [#allocation12], 2048
    $region77: #{tpu_custom_call.1} parent=1 // pred_fallthru
      _
    // Predicated region
    $region78: #{tpu_custom_call.1} parent=1 // pred_check
      _
    $region79: #{tpu_custom_call.1} parent=1 // pred_check_branch
      %138 = sbr.rel (0) target = $region81
    $region80: #{tpu_custom_call.1} parent=1 // pred_region
      %139 = dma.done [#allocation12], 1024
    $region81: #{tpu_custom_call.1} parent=1 // pred_fallthru
      _
    %v141 = vld [vmem:[%s0] sm:$0xf]
    %v142 = vld [vmem:[%s0 + $0x4] sm:$0xf]
    %v143 = vld [vmem:[%s1] sm:$0xf]
    %v144 = vld [vmem:[%s1 + $0x4] sm:$0xf]
    %v145 = vld [vmem:[%s2] sm:$0xf]
    %v146 = vld [vmem:[%s2 + $0x4] sm:$0xf]
    %v147 = vld [vmem:[#allocation2] sm:$0xf]
    %v148 = vld [vmem:[#allocation2 + $0x4] sm:$0xf]
    %v149 = vld [vmem:[#allocation5] sm:$0xf]
    %v150 = vld [vmem:[#allocation5 + $0x4] sm:$0xf]
    %v151 = vld [vmem:[#allocation7] sm:$0xf]
    %v152 = vld [vmem:[#allocation7 + $0x4] sm:$0xf]
    %v153 = vld [vmem:[%s6] sm:$0xff]
    %v154 = vld [vmem:[%s6 + $0x8] sm:$0xff]
    %v155 = vld [vmem:[%s11] sm:$0x1]
    %v156 = vld [vmem:[%s12] sm:$0x1]
    %v157 = vld [vmem:[#allocation8] sm:$0xff]
    %v158 = vld [vmem:[#allocation8 + $0x8] sm:$0xff]
    %v159 = vld [vmem:[#allocation8 + $0x10] sm:$0xff]
    %v160 = vld [vmem:[#allocation8 + $0x18] sm:$0xff]
    %v161 = vld [vmem:[#allocation8 + $0x20] sm:$0xff]
    %v162 = vld [vmem:[#allocation8 + $0x28] sm:$0xff]
    %v163 = vld [vmem:[#allocation8 + $0x30] sm:$0xff]
    %v164 = vld [vmem:[#allocation8 + $0x38] sm:$0xff]
    %v165 = vld [vmem:[#allocation8 + $0x40] sm:$0xff]
    %v166 = vld [vmem:[#allocation8 + $0x48] sm:$0xff]
    %v167 = vld [vmem:[#allocation8 + $0x50] sm:$0xff]
    %v168 = vld [vmem:[#allocation8 + $0x58] sm:$0xff]
    %v169 = vld [vmem:[#allocation8 + $0x60] sm:$0xff]
    %v170 = vld [vmem:[#allocation8 + $0x68] sm:$0xff]
    %v171 = vld [vmem:[#allocation8 + $0x70] sm:$0xff]
    %v172 = vld [vmem:[#allocation8 + $0x78] sm:$0xff]
    %v175 = vunpack.c.l.b16 %v147
    %v176 = vunpack.c.l.b16 %v148
    %v177 = vpack.c.b16 %v176, %v175
    %v195 = vunpack.c.l.b16 %v157
    %v196 = vunpack.c.h.b16 %v157
    %v197 = vunpack.c.l.b16 %v158
    %v198 = vunpack.c.h.b16 %v158
    %v199 = vunpack.c.l.b16 %v159
    %v200 = vunpack.c.h.b16 %v159
    %v201 = vunpack.c.l.b16 %v160
    %v202 = vunpack.c.h.b16 %v160
    %v203 = vunpack.c.l.b16 %v161
    %v204 = vunpack.c.h.b16 %v161
    %v205 = vunpack.c.l.b16 %v162
    %v206 = vunpack.c.h.b16 %v162
    %v207 = vunpack.c.l.b16 %v163
    %v208 = vunpack.c.h.b16 %v163
    %v209 = vunpack.c.l.b16 %v164
    %v210 = vunpack.c.h.b16 %v164
    %v211 = vunpack.c.l.b16 %v165
    %v212 = vunpack.c.h.b16 %v165
    %v213 = vunpack.c.l.b16 %v166
    %v214 = vunpack.c.h.b16 %v166
    %v215 = vunpack.c.l.b16 %v167
    %v216 = vunpack.c.h.b16 %v167
    %v217 = vunpack.c.l.b16 %v168
    %v218 = vunpack.c.h.b16 %v168
    %v219 = vunpack.c.l.b16 %v169
    %v220 = vunpack.c.h.b16 %v169
    %v221 = vunpack.c.l.b16 %v170
    %v222 = vunpack.c.h.b16 %v170
    %v223 = vunpack.c.l.b16 %v171
    %v224 = vunpack.c.h.b16 %v171
    %v225 = vunpack.c.l.b16 %v172
    %v226 = vunpack.c.h.b16 %v172
    %v227 = vpack.c.b16 %v197, %v195
    %v228 = vpack.c.b16 %v198, %v196
    %v229 = vpack.c.b16 %v201, %v199
    %v230 = vpack.c.b16 %v202, %v200
    %v231 = vpack.c.b16 %v205, %v203
    %v232 = vpack.c.b16 %v206, %v204
    %v233 = vpack.c.b16 %v209, %v207
    %v234 = vpack.c.b16 %v210, %v208
    %v235 = vpack.c.b16 %v213, %v211
    %v236 = vpack.c.b16 %v214, %v212
    %v237 = vpack.c.b16 %v217, %v215
    %v238 = vpack.c.b16 %v218, %v216
    %v239 = vpack.c.b16 %v221, %v219
    %v240 = vpack.c.b16 %v222, %v220
    %v241 = vpack.c.b16 %v225, %v223
    %v242 = vpack.c.b16 %v226, %v224
    %259 = vmatprep.subr.bf16.mxu0 %v242
    %260 = vmatpush1.bf16.msra.mxu0 %v241
    %261 = vmatprep.subr.bf16.mxu0 %v240
    %262 = vmatpush1.bf16.msra.mxu0 %v239
    %263 = vmatprep.subr.bf16.mxu0 %v238
    %264 = vmatpush1.bf16.msra.mxu0 %v237
    %265 = vmatprep.subr.bf16.mxu0 %v236
    %266 = vmatpush1.bf16.msra.mxu0 %v235
    %267 = vmatprep.subr.bf16.mxu0 %v234
    %268 = vmatpush1.bf16.msra.mxu0 %v233
    %269 = vmatprep.subr.bf16.mxu0 %v232
    %270 = vmatpush1.bf16.msra.mxu0 %v231
    %271 = vmatprep.subr.bf16.mxu0 %v230
    %272 = vmatpush1.bf16.msra.mxu0 %v229
    %273 = vmatprep.subr.bf16.mxu0 %v228
    %274 = vmatpush1.bf16.msra.mxu0 %v227
    %275 = vmatprep.subr.bf16.mxu0 0
    %276 = vmatpush2.bf16.msra.mxu0 0
    %277 = vmatprep.subr.bf16.mxu0 0
    %278 = vmatpush2.bf16.msra.mxu0 0
    %279 = vmatprep.subr.bf16.mxu0 0
    %280 = vmatpush2.bf16.msra.mxu0 0
    %281 = vmatprep.subr.bf16.mxu0 0
    %282 = vmatpush2.bf16.msra.mxu0 0
    %283 = vmatprep.subr.bf16.mxu0 0
    %284 = vmatpush2.bf16.msra.mxu0 0
    %285 = vmatprep.subr.bf16.mxu0 0
    %286 = vmatpush2.bf16.msra.mxu0 0
    %287 = vmatprep.subr.bf16.mxu0 0
    %288 = vmatpush2.bf16.msra.mxu0 0
    %289 = vmatprep.subr.bf16.mxu0 0
    %290 = vmatpush2.bf16.msra.mxu0 0
    %291 = vmatprep.mubr.bf16.mxu0 0
    %292 = vmatmul.mubr.bf16.gmra.mxu0 %v177
    %v293 = vpop.f32.mrf.mxu0
    %v294 = vadd.f32 0.0, %v293
    %v295 = vpop.f32.mrf.mxu0
    %v296 = vadd.f32 0.0, %v295
    %v297 = vpop.f32.mrf.mxu0
    %v298 = vadd.f32 0.0, %v297
    %v299 = vpop.f32.mrf.mxu0
    %v300 = vadd.f32 0.0, %v299
    %301 = vdwg.mxu0
    %v302 = vld [vmem:[#allocation10] sm:$0xff]
    %v303 = vld [vmem:[#allocation10 + $0x8] sm:$0xf]
    %v304 = vld [vmem:[#allocation10 + $0xc] sm:$0xff]
    %v305 = vld [vmem:[#allocation10 + $0x14] sm:$0xf]
    %v306 = vld [vmem:[#allocation10 + $0x18] sm:$0xff]
    %v307 = vld [vmem:[#allocation10 + $0x20] sm:$0xf]
    %v308 = vld [vmem:[#allocation10 + $0x24] sm:$0xff]
    %v309 = vld [vmem:[#allocation10 + $0x2c] sm:$0xf]
    %v310 = vld [vmem:[#allocation10 + $0x30] sm:$0xff]
    %v311 = vld [vmem:[#allocation10 + $0x38] sm:$0xf]
    %v312 = vld [vmem:[#allocation10 + $0x3c] sm:$0xff]
    %v313 = vld [vmem:[#allocation10 + $0x44] sm:$0xf]
    %v314 = vld [vmem:[#allocation10 + $0x48] sm:$0xff]
    %v315 = vld [vmem:[#allocation10 + $0x50] sm:$0xf]
    %v316 = vld [vmem:[#allocation10 + $0x54] sm:$0xff]
    %v317 = vld [vmem:[#allocation10 + $0x5c] sm:$0xf]
    %v318 = vld [vmem:[#allocation10 + $0x60] sm:$0xff]
    %v319 = vld [vmem:[#allocation10 + $0x68] sm:$0xf]
    %v320 = vld [vmem:[#allocation10 + $0x6c] sm:$0xff]
    %v321 = vld [vmem:[#allocation10 + $0x74] sm:$0xf]
    %v322 = vld [vmem:[#allocation10 + $0x78] sm:$0xff]
    %v323 = vld [vmem:[#allocation10 + $0x80] sm:$0xf]
    %v324 = vld [vmem:[#allocation10 + $0x84] sm:$0xff]
    %v325 = vld [vmem:[#allocation10 + $0x8c] sm:$0xf]
    %v326 = vld [vmem:[#allocation10 + $0x90] sm:$0xff]
    %v327 = vld [vmem:[#allocation10 + $0x98] sm:$0xf]
    %v328 = vld [vmem:[#allocation10 + $0x9c] sm:$0xff]
    %v329 = vld [vmem:[#allocation10 + $0xa4] sm:$0xf]
    %v330 = vld [vmem:[#allocation10 + $0xa8] sm:$0xff]
    %v331 = vld [vmem:[#allocation10 + $0xb0] sm:$0xf]
    %v332 = vld [vmem:[#allocation10 + $0xb4] sm:$0xff]
    %v333 = vld [vmem:[#allocation10 + $0xbc] sm:$0xf]
    %v336 = vunpack.c.l.b16 %v149
    %v337 = vunpack.c.l.b16 %v150
    %v338 = vpack.c.b16 %v337, %v336
    %v372 = vunpack.c.l.b16 %v302
    %v373 = vunpack.c.h.b16 %v302
    %v374 = vunpack.c.l.b16 %v303
    %v375 = vunpack.c.l.b16 %v304
    %v376 = vunpack.c.h.b16 %v304
    %v377 = vunpack.c.l.b16 %v305
    %v378 = vunpack.c.l.b16 %v306
    %v379 = vunpack.c.h.b16 %v306
    %v380 = vunpack.c.l.b16 %v307
    %v381 = vunpack.c.l.b16 %v308
    %v382 = vunpack.c.h.b16 %v308
    %v383 = vunpack.c.l.b16 %v309
    %v384 = vunpack.c.l.b16 %v310
    %v385 = vunpack.c.h.b16 %v310
    %v386 = vunpack.c.l.b16 %v311
    %v387 = vunpack.c.l.b16 %v312
    %v388 = vunpack.c.h.b16 %v312
    %v389 = vunpack.c.l.b16 %v313
    %v390 = vunpack.c.l.b16 %v314
    %v391 = vunpack.c.h.b16 %v314
    %v392 = vunpack.c.l.b16 %v315
    %v393 = vunpack.c.l.b16 %v316
    %v394 = vunpack.c.h.b16 %v316
    %v395 = vunpack.c.l.b16 %v317
    %v396 = vunpack.c.l.b16 %v318
    %v397 = vunpack.c.h.b16 %v318
    %v398 = vunpack.c.l.b16 %v319
    %v399 = vunpack.c.l.b16 %v320
    %v400 = vunpack.c.h.b16 %v320
    %v401 = vunpack.c.l.b16 %v321
    %v402 = vunpack.c.l.b16 %v322
    %v403 = vunpack.c.h.b16 %v322
    %v404 = vunpack.c.l.b16 %v323
    %v405 = vunpack.c.l.b16 %v324
    %v406 = vunpack.c.h.b16 %v324
    %v407 = vunpack.c.l.b16 %v325
    %v408 = vunpack.c.l.b16 %v326
    %v409 = vunpack.c.h.b16 %v326
    %v410 = vunpack.c.l.b16 %v327
    %v411 = vunpack.c.l.b16 %v328
    %v412 = vunpack.c.h.b16 %v328
    %v413 = vunpack.c.l.b16 %v329
    %v414 = vunpack.c.l.b16 %v330
    %v415 = vunpack.c.h.b16 %v330
    %v416 = vunpack.c.l.b16 %v331
    %v417 = vunpack.c.l.b16 %v332
    %v418 = vunpack.c.h.b16 %v332
    %v419 = vunpack.c.l.b16 %v333
    %v420 = vpack.c.b16 %v375, %v372
    %v421 = vpack.c.b16 %v376, %v373
    %v422 = vpack.c.b16 %v377, %v374
    %v423 = vpack.c.b16 %v381, %v378
    %v424 = vpack.c.b16 %v382, %v379
    %v425 = vpack.c.b16 %v383, %v380
    %v426 = vpack.c.b16 %v387, %v384
    %v427 = vpack.c.b16 %v388, %v385
    %v428 = vpack.c.b16 %v389, %v386
    %v429 = vpack.c.b16 %v393, %v390
    %v430 = vpack.c.b16 %v394, %v391
    %v431 = vpack.c.b16 %v395, %v392
    %v432 = vpack.c.b16 %v399, %v396
    %v433 = vpack.c.b16 %v400, %v397
    %v434 = vpack.c.b16 %v401, %v398
    %v435 = vpack.c.b16 %v405, %v402
    %v436 = vpack.c.b16 %v406, %v403
    %v437 = vpack.c.b16 %v407, %v404
    %v438 = vpack.c.b16 %v411, %v408
    %v439 = vpack.c.b16 %v412, %v409
    %v440 = vpack.c.b16 %v413, %v410
    %v441 = vpack.c.b16 %v417, %v414
    %v442 = vpack.c.b16 %v418, %v415
    %v443 = vpack.c.b16 %v419, %v416
    %468 = vmatprep.subr.bf16.mxu0 %v442
    %469 = vmatpush1.bf16.msra.mxu0 %v441
    %470 = vmatprep.subr.bf16.mxu0 %v439
    %471 = vmatpush1.bf16.msra.mxu0 %v438
    %472 = vmatprep.subr.bf16.mxu0 %v436
    %473 = vmatpush1.bf16.msra.mxu0 %v435
    %474 = vmatprep.subr.bf16.mxu0 %v433
    %475 = vmatpush1.bf16.msra.mxu0 %v432
    %476 = vmatprep.subr.bf16.mxu0 %v430
    %477 = vmatpush1.bf16.msra.mxu0 %v429
    %478 = vmatprep.subr.bf16.mxu0 %v427
    %479 = vmatpush1.bf16.msra.mxu0 %v426
    %480 = vmatprep.subr.bf16.mxu0 %v424
    %481 = vmatpush1.bf16.msra.mxu0 %v423
    %482 = vmatprep.subr.bf16.mxu0 %v421
    %483 = vmatpush1.bf16.msra.mxu0 %v420
    %484 = vmatprep.subr.bf16.mxu0 0
    %485 = vmatpush2.bf16.msra.mxu0 0
    %486 = vmatprep.subr.bf16.mxu0 0
    %487 = vmatpush2.bf16.msra.mxu0 0
    %488 = vmatprep.subr.bf16.mxu0 0
    %489 = vmatpush2.bf16.msra.mxu0 0
    %490 = vmatprep.subr.bf16.mxu0 0
    %491 = vmatpush2.bf16.msra.mxu0 0
    %492 = vmatprep.subr.bf16.mxu0 0
    %493 = vmatpush2.bf16.msra.mxu0 0
    %494 = vmatprep.subr.bf16.mxu0 0
    %495 = vmatpush2.bf16.msra.mxu0 0
    %496 = vmatprep.subr.bf16.mxu0 0
    %497 = vmatpush2.bf16.msra.mxu0 0
    %498 = vmatprep.subr.bf16.mxu0 0
    %499 = vmatpush2.bf16.msra.mxu0 0
    %500 = vmatprep.mubr.bf16.mxu0 0
    %501 = vmatmul.mubr.bf16.gmra.mxu0 %v338
    %v502 = vpop.f32.mrf.mxu0
    %v503 = vadd.f32 0.0, %v502
    %v504 = vpop.f32.mrf.mxu0
    %v505 = vadd.f32 0.0, %v504
    %v506 = vpop.f32.mrf.mxu0
    %v507 = vadd.f32 0.0, %v506
    %v508 = vpop.f32.mrf.mxu0
    %v509 = vadd.f32 0.0, %v508
    %510 = vdwg.mxu0
    %511 = vmatprep.subr.bf16.mxu0 0
    %512 = vmatpush1.bf16.msra.mxu0 %v443
    %513 = vmatprep.subr.bf16.mxu0 0
    %514 = vmatpush1.bf16.msra.mxu0 %v440
    %515 = vmatprep.subr.bf16.mxu0 0
    %516 = vmatpush1.bf16.msra.mxu0 %v437
    %517 = vmatprep.subr.bf16.mxu0 0
    %518 = vmatpush1.bf16.msra.mxu0 %v434
    %519 = vmatprep.subr.bf16.mxu0 0
    %520 = vmatpush1.bf16.msra.mxu0 %v431
    %521 = vmatprep.subr.bf16.mxu0 0
    %522 = vmatpush1.bf16.msra.mxu0 %v428
    %523 = vmatprep.subr.bf16.mxu0 0
    %524 = vmatpush1.bf16.msra.mxu0 %v425
    %525 = vmatprep.subr.bf16.mxu0 0
    %526 = vmatpush1.bf16.msra.mxu0 %v422
    %527 = vmatprep.subr.bf16.mxu0 0
    %528 = vmatpush2.bf16.msra.mxu0 0
    %529 = vmatprep.subr.bf16.mxu0 0
    %530 = vmatpush2.bf16.msra.mxu0 0
    %531 = vmatprep.subr.bf16.mxu0 0
    %532 = vmatpush2.bf16.msra.mxu0 0
    %533 = vmatprep.subr.bf16.mxu0 0
    %534 = vmatpush2.bf16.msra.mxu0 0
    %535 = vmatprep.subr.bf16.mxu0 0
    %536 = vmatpush2.bf16.msra.mxu0 0
    %537 = vmatprep.subr.bf16.mxu0 0
    %538 = vmatpush2.bf16.msra.mxu0 0
    %539 = vmatprep.subr.bf16.mxu0 0
    %540 = vmatpush2.bf16.msra.mxu0 0
    %541 = vmatprep.subr.bf16.mxu0 0
    %542 = vmatpush2.bf16.msra.mxu0 0
    %543 = vmatprep.mubr.bf16.mxu0 0
    %544 = vmatmul.mubr.bf16.gmra.mxu0 %v338
    %v545 = vpop.f32.mrf.mxu0
    %v546 = vadd.f32 0.0, %v545
    %v547 = vpop.f32.mrf.mxu0
    %v548 = vpop.f32.mrf.mxu0
    %v549 = vadd.f32 0.0, %v548
    %v550 = vpop.f32.mrf.mxu0
    %551 = vdwg.mxu0
    %v552 = vld [vmem:[#allocation11] sm:$0xff]
    %v553 = vld [vmem:[#allocation11 + $0x8] sm:$0xff]
    %v554 = vld [vmem:[#allocation11 + $0x10] sm:$0xff]
    %v555 = vld [vmem:[#allocation11 + $0x18] sm:$0xff]
    %v556 = vld [vmem:[#allocation11 + $0x20] sm:$0xff]
    %v557 = vld [vmem:[#allocation11 + $0x28] sm:$0xff]
    %v558 = vld [vmem:[#allocation11 + $0x30] sm:$0xff]
    %v559 = vld [vmem:[#allocation11 + $0x38] sm:$0xff]
    %v560 = vld [vmem:[#allocation11 + $0x40] sm:$0xff]
    %v561 = vld [vmem:[#allocation11 + $0x48] sm:$0xff]
    %v562 = vld [vmem:[#allocation11 + $0x50] sm:$0xff]
    %v563 = vld [vmem:[#allocation11 + $0x58] sm:$0xff]
    %v564 = vld [vmem:[#allocation11 + $0x60] sm:$0xff]
    %v565 = vld [vmem:[#allocation11 + $0x68] sm:$0xff]
    %v566 = vld [vmem:[#allocation11 + $0x70] sm:$0xff]
    %v567 = vld [vmem:[#allocation11 + $0x78] sm:$0xff]
    %v570 = vunpack.c.l.b16 %v151
    %v571 = vunpack.c.l.b16 %v152
    %v572 = vpack.c.b16 %v571, %v570
    %v590 = vunpack.c.l.b16 %v552
    %v591 = vunpack.c.h.b16 %v552
    %v592 = vunpack.c.l.b16 %v553
    %v593 = vunpack.c.h.b16 %v553
    %v594 = vunpack.c.l.b16 %v554
    %v595 = vunpack.c.h.b16 %v554
    %v596 = vunpack.c.l.b16 %v555
    %v597 = vunpack.c.h.b16 %v555
    %v598 = vunpack.c.l.b16 %v556
    %v599 = vunpack.c.h.b16 %v556
    %v600 = vunpack.c.l.b16 %v557
    %v601 = vunpack.c.h.b16 %v557
    %v602 = vunpack.c.l.b16 %v558
    %v603 = vunpack.c.h.b16 %v558
    %v604 = vunpack.c.l.b16 %v559
    %v605 = vunpack.c.h.b16 %v559
    %v606 = vunpack.c.l.b16 %v560
    %v607 = vunpack.c.h.b16 %v560
    %v608 = vunpack.c.l.b16 %v561
    %v609 = vunpack.c.h.b16 %v561
    %v610 = vunpack.c.l.b16 %v562
    %v611 = vunpack.c.h.b16 %v562
    %v612 = vunpack.c.l.b16 %v563
    %v613 = vunpack.c.h.b16 %v563
    %v614 = vunpack.c.l.b16 %v564
    %v615 = vunpack.c.h.b16 %v564
    %v616 = vunpack.c.l.b16 %v565
    %v617 = vunpack.c.h.b16 %v565
    %v618 = vunpack.c.l.b16 %v566
    %v619 = vunpack.c.h.b16 %v566
    %v620 = vunpack.c.l.b16 %v567
    %v621 = vunpack.c.h.b16 %v567
    %v622 = vpack.c.b16 %v592, %v590
    %v623 = vpack.c.b16 %v593, %v591
    %v624 = vpack.c.b16 %v596, %v594
    %v625 = vpack.c.b16 %v597, %v595
    %v626 = vpack.c.b16 %v600, %v598
    %v627 = vpack.c.b16 %v601, %v599
    %v628 = vpack.c.b16 %v604, %v602
    %v629 = vpack.c.b16 %v605, %v603
    %v630 = vpack.c.b16 %v608, %v606
    %v631 = vpack.c.b16 %v609, %v607
    %v632 = vpack.c.b16 %v612, %v610
    %v633 = vpack.c.b16 %v613, %v611
    %v634 = vpack.c.b16 %v616, %v614
    %v635 = vpack.c.b16 %v617, %v615
    %v636 = vpack.c.b16 %v620, %v618
    %v637 = vpack.c.b16 %v621, %v619
    %654 = vmatprep.subr.bf16.mxu0 %v637
    %655 = vmatpush1.bf16.msra.mxu0 %v636
    %656 = vmatprep.subr.bf16.mxu0 %v635
    %657 = vmatpush1.bf16.msra.mxu0 %v634
    %658 = vmatprep.subr.bf16.mxu0 %v633
    %659 = vmatpush1.bf16.msra.mxu0 %v632
    %660 = vmatprep.subr.bf16.mxu0 %v631
    %661 = vmatpush1.bf16.msra.mxu0 %v630
    %662 = vmatprep.subr.bf16.mxu0 %v629
    %663 = vmatpush1.bf16.msra.mxu0 %v628
    %664 = vmatprep.subr.bf16.mxu0 %v627
    %665 = vmatpush1.bf16.msra.mxu0 %v626
    %666 = vmatprep.subr.bf16.mxu0 %v625
    %667 = vmatpush1.bf16.msra.mxu0 %v624
    %668 = vmatprep.subr.bf16.mxu0 %v623
    %669 = vmatpush1.bf16.msra.mxu0 %v622
    %670 = vmatprep.subr.bf16.mxu0 0
    %671 = vmatpush2.bf16.msra.mxu0 0
    %672 = vmatprep.subr.bf16.mxu0 0
    %673 = vmatpush2.bf16.msra.mxu0 0
    %674 = vmatprep.subr.bf16.mxu0 0
    %675 = vmatpush2.bf16.msra.mxu0 0
    %676 = vmatprep.subr.bf16.mxu0 0
    %677 = vmatpush2.bf16.msra.mxu0 0
    %678 = vmatprep.subr.bf16.mxu0 0
    %679 = vmatpush2.bf16.msra.mxu0 0
    %680 = vmatprep.subr.bf16.mxu0 0
    %681 = vmatpush2.bf16.msra.mxu0 0
    %682 = vmatprep.subr.bf16.mxu0 0
    %683 = vmatpush2.bf16.msra.mxu0 0
    %684 = vmatprep.subr.bf16.mxu0 0
    %685 = vmatpush2.bf16.msra.mxu0 0
    %686 = vmatprep.mubr.bf16.mxu0 0
    %687 = vmatmul.mubr.bf16.gmra.mxu0 %v572
    %v688 = vpop.f32.mrf.mxu0
    %v689 = vadd.f32 0.0, %v688
    %v690 = vpop.f32.mrf.mxu0
    %v691 = vadd.f32 0.0, %v690
    %v692 = vpop.f32.mrf.mxu0
    %v693 = vadd.f32 0.0, %v692
    %v694 = vpop.f32.mrf.mxu0
    %v695 = vadd.f32 0.0, %v694
    %696 = vdwg.mxu0
    %v697 = vld [vmem:[#allocation13] sm:$0xf]
    %v698 = vld [vmem:[#allocation13 + $0x4] sm:$0xf]
    %v699 = vld [vmem:[#allocation13 + $0x8] sm:$0xf]
    %v700 = vld [vmem:[#allocation13 + $0xc] sm:$0xf]
    %v701 = vld [vmem:[#allocation13 + $0x10] sm:$0xf]
    %v702 = vld [vmem:[#allocation13 + $0x14] sm:$0xf]
    %v703 = vld [vmem:[#allocation13 + $0x18] sm:$0xf]
    %v704 = vld [vmem:[#allocation13 + $0x1c] sm:$0xf]
    %v705 = vld [vmem:[#allocation13 + $0x20] sm:$0xf]
    %v706 = vld [vmem:[#allocation13 + $0x24] sm:$0xf]
    %v707 = vld [vmem:[#allocation13 + $0x28] sm:$0xf]
    %v708 = vld [vmem:[#allocation13 + $0x2c] sm:$0xf]
    %v709 = vld [vmem:[#allocation13 + $0x30] sm:$0xf]
    %v710 = vld [vmem:[#allocation13 + $0x34] sm:$0xf]
    %v711 = vld [vmem:[#allocation13 + $0x38] sm:$0xf]
    %v712 = vld [vmem:[#allocation13 + $0x3c] sm:$0xf]
    %v713 = vadd.f32 %v294, %v505
    %v714 = vadd.f32 %v298, %v509
    %v716 = vlaneseq
    %v717 = vshrl.u32 %v716, 7
    %v718 = vsub.s32 0, %v717
    %v719 = vrot.slane %v155, %v718
    %v721 = vadd.f32 %v713, %v719
    %v722 = vadd.f32 %v714, %v719
    %v723 = vadd.f32 %v294, %v689
    %v724 = vadd.f32 %v298, %v693
    %v725 = vadd.f32 %v723, %v719
    %v726 = vadd.f32 %v724, %v719
    %v727 = vadd.f32 %v503, %v689
    %v728 = vadd.f32 %v507, %v693
    %v729 = vadd.f32 %v727, %v719
    %v730 = vadd.f32 %v728, %v719
    %v731 = vunpack.c.l.bf16 %v147
    %v732 = vunpack.c.l.bf16 %v148
    %v733 = vunpack.c.l.bf16 %v149
    %v734 = vunpack.c.l.bf16 %v150
    %v735 = vmul.f32 %v731, %v733
    %v736 = vmul.f32 %v732, %v734
    %737 = vadd.xlane.f32.xlu0 %v735
    %v738 = vpop.xlane.xlu0 %737
    %739 = vadd.xlane.f32.xlu0 %v736
    %v740 = vpop.xlane.xlu0 %739
    %v741 = vunpack.c.l.bf16 %v151
    %v742 = vunpack.c.l.bf16 %v152
    %v743 = vmul.f32 %v731, %v741
    %v744 = vmul.f32 %v732, %v742
    %745 = vadd.xlane.f32.xlu0 %v743
    %v746 = vpop.xlane.xlu0 %745
    %747 = vadd.xlane.f32.xlu0 %v744
    %v748 = vpop.xlane.xlu0 %747
    %v749 = vmul.f32 %v733, %v741
    %v750 = vmul.f32 %v734, %v742
    %751 = vadd.xlane.f32.xlu0 %v749
    %v752 = vpop.xlane.xlu0 %751
    %753 = vadd.xlane.f32.xlu0 %v750
    %v754 = vpop.xlane.xlu0 %753
    %757 = vrot.lane.b32.xlu0 %v153, 127
    %v758 = vpop.permute.xlu0 %757
    %759 = vrot.lane.b32.xlu0 %v154, 127
    %v760 = vpop.permute.xlu0 %759
    %v763 = vadd.f32 %v153, %v758
    %v764 = vadd.f32 %v154, %v760
    %v765 = vadd.f32 %v738, 0.5
    %v766 = vadd.f32 %v740, 0.5
    %v767 = vrcp.pop %v765
    %v768 = vmul.f32 %v763, %v767
    %v769 = vrcp.pop %v766
    %v770 = vmul.f32 %v764, %v769
    %771 = vrot.lane.b32.xlu0 %v153, 126
    %v772 = vpop.permute.xlu0 %771
    %773 = vrot.lane.b32.xlu0 %v154, 126
    %v774 = vpop.permute.xlu0 %773
    %v777 = vadd.f32 %v153, %v772
    %v778 = vadd.f32 %v154, %v774
    %v779 = vadd.f32 %v746, 0.5
    %v780 = vadd.f32 %v748, 0.5
    %v781 = vrcp.pop %v779
    %v782 = vmul.f32 %v777, %v781
    %v783 = vrcp.pop %v780
    %v784 = vmul.f32 %v778, %v783
    %v785 = vadd.f32 %v752, 0.5
    %v786 = vadd.f32 %v754, 0.5
    %v787 = vrcp.pop %v785
    %v788 = vmul.f32 %v763, %v787
    %v789 = vrcp.pop %v786
    %v790 = vmul.f32 %v764, %v789
    %793 = vrot.lane.b32.xlu0 %v788, 127
    %v794 = vpop.permute.xlu0 %793
    %795 = vrot.lane.b32.xlu0 %v790, 127
    %v796 = vpop.permute.xlu0 %795
    %v799 = vadd.f32 %v782, %v794
    %v800 = vadd.f32 %v784, %v796
    %v801 = vrcp.pop %v799
    %v802 = vmul.f32 %v768, %v801
    %v803 = vrcp.pop %v800
    %v804 = vmul.f32 %v770, %v803
    %v805 = vadd.f32 %v768, %v794
    %v806 = vadd.f32 %v770, %v796
    %v807 = vrcp.pop %v805
    %v808 = vmul.f32 %v782, %v807
    %v809 = vrcp.pop %v806
    %v810 = vmul.f32 %v784, %v809
    %v811 = vadd.f32 %v768, %v782
    %v812 = vadd.f32 %v770, %v784
    %815 = vrot.lane.b32.xlu0 %v811, 1
    %v816 = vpop.permute.xlu0 %815
    %817 = vrot.lane.b32.xlu0 %v812, 1
    %v818 = vpop.permute.xlu0 %817
    %v821 = vrcp.pop %v816
    %v822 = vmul.f32 %v788, %v821
    %v823 = vrcp.pop %v818
    %v824 = vmul.f32 %v790, %v823
    %v827 = vunpack.c.l.b16 %v141
    %v828 = vunpack.c.l.b16 %v142
    %v829 = vpack.c.b16 %v828, %v827
    %v847 = vunpack.c.l.b16 %v697
    %v848 = vunpack.c.l.b16 %v698
    %v849 = vunpack.c.l.b16 %v699
    %v850 = vunpack.c.l.b16 %v700
    %v851 = vunpack.c.l.b16 %v701
    %v852 = vunpack.c.l.b16 %v702
    %v853 = vunpack.c.l.b16 %v703
    %v854 = vunpack.c.l.b16 %v704
    %v855 = vunpack.c.l.b16 %v705
    %v856 = vunpack.c.l.b16 %v706
    %v857 = vunpack.c.l.b16 %v707
    %v858 = vunpack.c.l.b16 %v708
    %v859 = vunpack.c.l.b16 %v709
    %v860 = vunpack.c.l.b16 %v710
    %v861 = vunpack.c.l.b16 %v711
    %v862 = vunpack.c.l.b16 %v712
    %v863 = vpack.c.b16 %v848, %v847
    %v864 = vpack.c.b16 %v850, %v849
    %v865 = vpack.c.b16 %v852, %v851
    %v866 = vpack.c.b16 %v854, %v853
    %v867 = vpack.c.b16 %v856, %v855
    %v868 = vpack.c.b16 %v858, %v857
    %v869 = vpack.c.b16 %v860, %v859
    %v870 = vpack.c.b16 %v862, %v861
    %879 = vmatprep.subr.bf16.mxu0 0
    %880 = vmatpush1.bf16.msra.mxu0 %v870
    %881 = vmatprep.subr.bf16.mxu0 0
    %882 = vmatpush1.bf16.msra.mxu0 %v869
    %883 = vmatprep.subr.bf16.mxu0 0
    %884 = vmatpush1.bf16.msra.mxu0 %v868
    %885 = vmatprep.subr.bf16.mxu0 0
    %886 = vmatpush1.bf16.msra.mxu0 %v867
    %887 = vmatprep.subr.bf16.mxu0 0
    %888 = vmatpush1.bf16.msra.mxu0 %v866
    %889 = vmatprep.subr.bf16.mxu0 0
    %890 = vmatpush1.bf16.msra.mxu0 %v865
    %891 = vmatprep.subr.bf16.mxu0 0
    %892 = vmatpush1.bf16.msra.mxu0 %v864
    %893 = vmatprep.subr.bf16.mxu0 0
    %894 = vmatpush1.bf16.msra.mxu0 %v863
    %895 = vmatprep.subr.bf16.mxu0 0
    %896 = vmatpush2.bf16.msra.mxu0 0
    %897 = vmatprep.subr.bf16.mxu0 0
    %898 = vmatpush2.bf16.msra.mxu0 0
    %899 = vmatprep.subr.bf16.mxu0 0
    %900 = vmatpush2.bf16.msra.mxu0 0
    %901 = vmatprep.subr.bf16.mxu0 0
    %902 = vmatpush2.bf16.msra.mxu0 0
    %903 = vmatprep.subr.bf16.mxu0 0
    %904 = vmatpush2.bf16.msra.mxu0 0
    %905 = vmatprep.subr.bf16.mxu0 0
    %906 = vmatpush2.bf16.msra.mxu0 0
    %907 = vmatprep.subr.bf16.mxu0 0
    %908 = vmatpush2.bf16.msra.mxu0 0
    %909 = vmatprep.subr.bf16.mxu0 0
    %910 = vmatpush2.bf16.msra.mxu0 0
    %911 = vmatprep.mubr.bf16.mxu0 0
    %912 = vmatmul.mubr.bf16.gmra.mxu0 %v829
    %v913 = vpop.f32.mrf.mxu0
    %v914 = vadd.f32 %v691, %v913
    %v915 = vpop.f32.mrf.mxu0
    %v916 = vpop.f32.mrf.mxu0
    %v917 = vadd.f32 %v695, %v916
    %v918 = vpop.f32.mrf.mxu0
    %919 = vdwg.mxu0
    %v921 = vlaneseq
    %v922 = vshrl.u32 %v921, 7
    %v923 = vsub.s32 0, %v922
    %v924 = vrot.slane %v156, %v923
    %v926 = vadd.f32 %v914, %v924
    %v927 = vadd.f32 %v917, %v924
    %v930 = vunpack.c.l.b16 %v143
    %v931 = vunpack.c.l.b16 %v144
    %v932 = vpack.c.b16 %v931, %v930
    %934 = vmatprep.subr.bf16.mxu0 0
    %935 = vmatpush1.bf16.msra.mxu0 %v870
    %936 = vmatprep.subr.bf16.mxu0 0
    %937 = vmatpush1.bf16.msra.mxu0 %v869
    %938 = vmatprep.subr.bf16.mxu0 0
    %939 = vmatpush1.bf16.msra.mxu0 %v868
    %940 = vmatprep.subr.bf16.mxu0 0
    %941 = vmatpush1.bf16.msra.mxu0 %v867
    %942 = vmatprep.subr.bf16.mxu0 0
    %943 = vmatpush1.bf16.msra.mxu0 %v866
    %944 = vmatprep.subr.bf16.mxu0 0
    %945 = vmatpush1.bf16.msra.mxu0 %v865
    %946 = vmatprep.subr.bf16.mxu0 0
    %947 = vmatpush1.bf16.msra.mxu0 %v864
    %948 = vmatprep.subr.bf16.mxu0 0
    %949 = vmatpush1.bf16.msra.mxu0 %v863
    %950 = vmatprep.subr.bf16.mxu0 0
    %951 = vmatpush2.bf16.msra.mxu0 0
    %952 = vmatprep.subr.bf16.mxu0 0
    %953 = vmatpush2.bf16.msra.mxu0 0
    %954 = vmatprep.subr.bf16.mxu0 0
    %955 = vmatpush2.bf16.msra.mxu0 0
    %956 = vmatprep.subr.bf16.mxu0 0
    %957 = vmatpush2.bf16.msra.mxu0 0
    %958 = vmatprep.subr.bf16.mxu0 0
    %959 = vmatpush2.bf16.msra.mxu0 0
    %960 = vmatprep.subr.bf16.mxu0 0
    %961 = vmatpush2.bf16.msra.mxu0 0
    %962 = vmatprep.subr.bf16.mxu0 0
    %963 = vmatpush2.bf16.msra.mxu0 0
    %964 = vmatprep.subr.bf16.mxu0 0
    %965 = vmatpush2.bf16.msra.mxu0 0
    %966 = vmatprep.mubr.bf16.mxu0 0
    %967 = vmatmul.mubr.bf16.gmra.mxu0 %v932
    %v968 = vpop.f32.mrf.mxu0
    %v969 = vadd.f32 %v546, %v968
    %v970 = vpop.f32.mrf.mxu0
    %v971 = vpop.f32.mrf.mxu0
    %v972 = vadd.f32 %v549, %v971
    %v973 = vpop.f32.mrf.mxu0
    %974 = vdwg.mxu0
    %v975 = vadd.f32 %v969, %v924
    %v976 = vadd.f32 %v972, %v924
    %v979 = vunpack.c.l.b16 %v145
    %v980 = vunpack.c.l.b16 %v146
    %v981 = vpack.c.b16 %v980, %v979
    %983 = vmatprep.subr.bf16.mxu0 0
    %984 = vmatpush1.bf16.msra.mxu0 %v870
    %985 = vmatprep.subr.bf16.mxu0 0
    %986 = vmatpush1.bf16.msra.mxu0 %v869
    %987 = vmatprep.subr.bf16.mxu0 0
    %988 = vmatpush1.bf16.msra.mxu0 %v868
    %989 = vmatprep.subr.bf16.mxu0 0
    %990 = vmatpush1.bf16.msra.mxu0 %v867
    %991 = vmatprep.subr.bf16.mxu0 0
    %992 = vmatpush1.bf16.msra.mxu0 %v866
    %993 = vmatprep.subr.bf16.mxu0 0
    %994 = vmatpush1.bf16.msra.mxu0 %v865
    %995 = vmatprep.subr.bf16.mxu0 0
    %996 = vmatpush1.bf16.msra.mxu0 %v864
    %997 = vmatprep.subr.bf16.mxu0 0
    %998 = vmatpush1.bf16.msra.mxu0 %v863
    %999 = vmatprep.subr.bf16.mxu0 0
    %1000 = vmatpush2.bf16.msra.mxu0 0
    %1001 = vmatprep.subr.bf16.mxu0 0
    %1002 = vmatpush2.bf16.msra.mxu0 0
    %1003 = vmatprep.subr.bf16.mxu0 0
    %1004 = vmatpush2.bf16.msra.mxu0 0
    %1005 = vmatprep.subr.bf16.mxu0 0
    %1006 = vmatpush2.bf16.msra.mxu0 0
    %1007 = vmatprep.subr.bf16.mxu0 0
    %1008 = vmatpush2.bf16.msra.mxu0 0
    %1009 = vmatprep.subr.bf16.mxu0 0
    %1010 = vmatpush2.bf16.msra.mxu0 0
    %1011 = vmatprep.subr.bf16.mxu0 0
    %1012 = vmatpush2.bf16.msra.mxu0 0
    %1013 = vmatprep.subr.bf16.mxu0 0
    %1014 = vmatpush2.bf16.msra.mxu0 0
    %1015 = vmatprep.mubr.bf16.mxu0 0
    %1016 = vmatmul.mubr.bf16.gmra.mxu0 %v981
    %v1017 = vpop.f32.mrf.mxu0
    %v1018 = vadd.f32 %v296, %v1017
    %v1019 = vpop.f32.mrf.mxu0
    %v1020 = vpop.f32.mrf.mxu0
    %v1021 = vadd.f32 %v300, %v1020
    %v1022 = vpop.f32.mrf.mxu0
    %1023 = vdwg.mxu0
    %v1024 = vadd.f32 %v1018, %v924
    %v1025 = vadd.f32 %v1021, %v924
    %v1026 = vunpack.c.l.bf16 %v141
    %v1027 = vunpack.c.l.bf16 %v142
    %v1028 = vmul.f32 %v1026, %v741
    %v1029 = vmul.f32 %v1027, %v742
    %1030 = vadd.xlane.f32.xlu0 %v1028
    %v1031 = vpop.xlane.xlu0 %1030
    %1032 = vadd.xlane.f32.xlu0 %v1029
    %v1033 = vpop.xlane.xlu0 %1032
    %v1034 = vunpack.c.l.bf16 %v143
    %v1035 = vunpack.c.l.bf16 %v144
    %v1036 = vmul.f32 %v1034, %v733
    %v1037 = vmul.f32 %v1035, %v734
    %1038 = vadd.xlane.f32.xlu0 %v1036
    %v1039 = vpop.xlane.xlu0 %1038
    %1040 = vadd.xlane.f32.xlu0 %v1037
    %v1041 = vpop.xlane.xlu0 %1040
    %v1042 = vunpack.c.l.bf16 %v145
    %v1043 = vunpack.c.l.bf16 %v146
    %v1044 = vmul.f32 %v1042, %v731
    %v1045 = vmul.f32 %v1043, %v732
    %1046 = vadd.xlane.f32.xlu0 %v1044
    %v1047 = vpop.xlane.xlu0 %1046
    %1048 = vadd.xlane.f32.xlu0 %v1045
    %v1049 = vpop.xlane.xlu0 %1048
    %1050 = vrot.lane.b32.xlu0 %v153, 123
    %v1051 = vpop.permute.xlu0 %1050
    %1052 = vrot.lane.b32.xlu0 %v154, 123
    %v1053 = vpop.permute.xlu0 %1052
    %v1056 = vadd.f32 %v153, %v1051
    %v1057 = vadd.f32 %v154, %v1053
    %v1058 = vadd.f32 %v1031, 0.5
    %v1059 = vadd.f32 %v1033, 0.5
    %v1060 = vrcp.pop %v1058
    %v1061 = vmul.f32 %v1056, %v1060
    %v1062 = vrcp.pop %v1059
    %v1063 = vmul.f32 %v1057, %v1062
    %1064 = vrot.lane.b32.xlu0 %v153, 125
    %v1065 = vpop.permute.xlu0 %1064
    %1066 = vrot.lane.b32.xlu0 %v154, 125
    %v1067 = vpop.permute.xlu0 %1066
    %v1070 = vadd.f32 %v153, %v1065
    %v1071 = vadd.f32 %v154, %v1067
    %v1072 = vadd.f32 %v1039, 0.5
    %v1073 = vadd.f32 %v1041, 0.5
    %v1074 = vrcp.pop %v1072
    %v1075 = vmul.f32 %v1070, %v1074
    %v1076 = vrcp.pop %v1073
    %v1077 = vmul.f32 %v1071, %v1076
    %v1078 = vadd.f32 %v1047, 0.5
    %v1079 = vadd.f32 %v1049, 0.5
    %v1080 = vrcp.pop %v1078
    %v1081 = vmul.f32 %v763, %v1080
    %v1082 = vrcp.pop %v1079
    %v1083 = vmul.f32 %v764, %v1082
    %1086 = vrot.lane.b32.xlu0 %v1081, 127
    %v1087 = vpop.permute.xlu0 %1086
    %1088 = vrot.lane.b32.xlu0 %v1083, 127
    %v1089 = vpop.permute.xlu0 %1088
    %v1092 = vadd.f32 %v1075, %v1087
    %v1093 = vadd.f32 %v1077, %v1089
    %1096 = vrot.lane.b32.xlu0 %v1092, 127
    %v1097 = vpop.permute.xlu0 %1096
    %1098 = vrot.lane.b32.xlu0 %v1093, 127
    %v1099 = vpop.permute.xlu0 %1098
    %v1102 = vrcp.pop %v1097
    %v1103 = vmul.f32 %v1061, %v1102
    %v1104 = vrcp.pop %v1099
    %v1105 = vmul.f32 %v1063, %v1104
    %1106 = vrot.lane.b32.xlu0 %v1081, 126
    %v1107 = vpop.permute.xlu0 %1106
    %1108 = vrot.lane.b32.xlu0 %v1083, 126
    %v1109 = vpop.permute.xlu0 %1108
    %v1112 = vadd.f32 %v1061, %v1107
    %v1113 = vadd.f32 %v1063, %v1109
    %1116 = vrot.lane.b32.xlu0 %v1112, 1
    %v1117 = vpop.permute.xlu0 %1116
    %1118 = vrot.lane.b32.xlu0 %v1113, 1
    %v1119 = vpop.permute.xlu0 %1118
    %v1122 = vrcp.pop %v1117
    %v1123 = vmul.f32 %v1075, %v1122
    %v1124 = vrcp.pop %v1119
    %v1125 = vmul.f32 %v1077, %v1124
    %1128 = vrot.lane.b32.xlu0 %v1075, 127
    %v1129 = vpop.permute.xlu0 %1128
    %1130 = vrot.lane.b32.xlu0 %v1077, 127
    %v1131 = vpop.permute.xlu0 %1130
    %v1134 = vadd.f32 %v1061, %v1129
    %v1135 = vadd.f32 %v1063, %v1131
    %1138 = vrot.lane.b32.xlu0 %v1134, 2
    %v1139 = vpop.permute.xlu0 %1138
    %1140 = vrot.lane.b32.xlu0 %v1135, 2
    %v1141 = vpop.permute.xlu0 %1140
    %v1144 = vrcp.pop %v1139
    %v1145 = vmul.f32 %v1081, %v1144
    %v1146 = vrcp.pop %v1141
    %v1147 = vmul.f32 %v1083, %v1146
    %1149 = vset.pattern.permute.xlu0 0
    %1150 = vperm.xlu0 %1149, %v1103
    %v1151 = vpop.permute.xlu0 %1150
    %1154 = vset.pattern.permute.xlu0 0
    %1155 = vperm.xlu0 %1154, %v1105
    %v1156 = vpop.permute.xlu0 %1155
    %v1158 = vmul.f32 %v1151, %v926
    %v1159 = vmul.f32 %v1156, %v927
    %1161 = vset.pattern.permute.xlu0 1
    %1162 = vperm.xlu0 %1161, %v1123
    %v1163 = vpop.permute.xlu0 %1162
    %1166 = vset.pattern.permute.xlu0 1
    %1167 = vperm.xlu0 %1166, %v1125
    %v1168 = vpop.permute.xlu0 %1167
    %v1170 = vmul.f32 %v1163, %v975
    %v1171 = vmul.f32 %v1168, %v976
    %v1172 = vadd.f32 %v1158, %v1170
    %v1173 = vadd.f32 %v1159, %v1171
    %1175 = vset.pattern.permute.xlu0 2
    %1176 = vperm.xlu0 %1175, %v1145
    %v1177 = vpop.permute.xlu0 %1176
    %1180 = vset.pattern.permute.xlu0 2
    %1181 = vperm.xlu0 %1180, %v1147
    %v1182 = vpop.permute.xlu0 %1181
    %v1184 = vmul.f32 %v1177, %v1024
    %v1185 = vmul.f32 %v1182, %v1025
    %v1186 = vadd.f32 %v1172, %v1184
    %v1187 = vadd.f32 %v1173, %v1185
    %1189 = vset.pattern.permute.xlu0 3
    %1190 = vperm.xlu0 %1189, %v802
    %v1191 = vpop.permute.xlu0 %1190
    %1194 = vset.pattern.permute.xlu0 3
    %1195 = vperm.xlu0 %1194, %v804
    %v1196 = vpop.permute.xlu0 %1195
    %v1198 = vmul.f32 %v1191, %v721
    %v1199 = vmul.f32 %v1196, %v722
    %v1200 = vadd.f32 %v1186, %v1198
    %v1201 = vadd.f32 %v1187, %v1199
    %1203 = vset.pattern.permute.xlu0 3
    %1204 = vperm.xlu0 %1203, %v808
    %v1205 = vpop.permute.xlu0 %1204
    %1208 = vset.pattern.permute.xlu0 3
    %1209 = vperm.xlu0 %1208, %v810
    %v1210 = vpop.permute.xlu0 %1209
    %v1212 = vmul.f32 %v1205, %v725
    %v1213 = vmul.f32 %v1210, %v726
    %v1214 = vadd.f32 %v1200, %v1212
    %v1215 = vadd.f32 %v1201, %v1213
    %1217 = vset.pattern.permute.xlu0 4
    %1218 = vperm.xlu0 %1217, %v822
    %v1219 = vpop.permute.xlu0 %1218
    %1222 = vset.pattern.permute.xlu0 4
    %1223 = vperm.xlu0 %1222, %v824
    %v1224 = vpop.permute.xlu0 %1223
    %v1226 = vmul.f32 %v1219, %v729
    %v1227 = vmul.f32 %v1224, %v730
    %v1228 = vadd.f32 %v1214, %v1226
    %v1229 = vadd.f32 %v1215, %v1227
    %1230 = vst [vmem:[#allocation14] sm:$0xff] %v1228
    %1231 = vst [vmem:[#allocation14 + $0x8] sm:$0xff] %v1229
    // Predicated region
    $region82: #{tpu_custom_call.1} parent=1 // pred_check
      _
    $region83: #{tpu_custom_call.1} parent=1 // pred_check_branch
      %1233 = sbr.rel (0) target = $region85
    $region84: #{tpu_custom_call.1} parent=1 // pred_region
      %s1235 = ssub.s32 256, 256
      %1236 = vsyncadd [#allocation4], %s1235
      %s1237 = sshll.u32 [#allocation14], 4
      %s1238 = int_to_ptr.vmem [resolvable:$true] %s1237
      %1243 = dma.vmem_to_hbm [thread:$0]  %s1238, 256, %s13, [#allocation4], 128, 128, 8
    $region85: #{tpu_custom_call.1} parent=1 // pred_fallthru
      _
    // Predicated region
    $region86: #{tpu_custom_call.1} parent=1 // pred_check
      _
    $region87: #{tpu_custom_call.1} parent=1 // pred_check_branch
      %1245 = sbr.rel (0) target = $region89
    $region88: #{tpu_custom_call.1} parent=1 // pred_region
      %1246 = dma.done [#allocation4], 256
    $region89: #{tpu_custom_call.1} parent=1 // pred_fallthru
      _
    %1247 = vsyncpa [#allocation3], 1
    %1248 = vsyncpa [#allocation6], 1
    %1249 = vsyncpa [#allocation9], 1
    %1250 = vsyncpa [#allocation12], 1
    %1251 = vsyncpa [#allocation4], 1

</llo_original>
